<compile_context>
chip_gen: v7x
topology: tpu7x:2x2x1
jax: 0.10.0
libtpu: 0.0.40
codegen_flags: <defaults>
</compile_context>

<pallas_src>
import functools
import numpy as np
import jax
import jax.numpy as jnp
from jax.experimental import pallas as pl
from jax.experimental.pallas import tpu as pltpu

TEMPERATURE = 34.0        # Dynamic_conv2d default (34 % 3 == 1)
K_EXPERTS = 4             # Dynamic_conv2d default K
RATIO = 0.25              # Dynamic_conv2d default ratio

_HEADROOM_BYTES = 2 * 1024 * 1024   # compiler-internal scratch / small relayouts


def _adaptive_pool_matrix(H, W, out_h, out_w):
    """(H*W, out_h*out_w) matrix implementing torch AdaptiveAvgPool2d exactly."""
    P = np.zeros((H * W, out_h * out_w), dtype=np.float32)
    for ph in range(out_h):
        hs = (ph * H) // out_h
        he = -(-((ph + 1) * H) // out_h)
        for pw in range(out_w):
            ws = (pw * W) // out_w
            we = -(-((pw + 1) * W) // out_w)
            n = (he - hs) * (we - ws)
            for h in range(hs, he):
                for w in range(ws, we):
                    P[h * W + w, ph * out_w + pw] = 1.0 / n
    return jnp.asarray(P)


def _ca_attention_kernel(x_ref, pmat_ref,
                         a1_fc1_ref, a1_fc2_ref, a1_fc2b_ref, dw1_ref, b1_ref,
                         a2_fc1_ref, a2_fc2_ref, a2_fc2b_ref, dw2_ref, b2_ref,
                         o_ref, *, bt, c, c16):
    hw = x_ref.shape[-1]

    # AdaptiveAvgPool2d(4) as one lane-dense MXU matmul with M = bt*c.
    # Operands stay in the model dtype; accumulation is f32.  No persistent
    # f32 copy of the block is kept live.
    x2d = x_ref[...].reshape(bt * c, hw)
    y1 = jnp.dot(x2d, pmat_ref[...], preferred_element_type=jnp.float32)  # (bt*c, 16)
    y1 = y1.reshape(bt, c, 16)

    def dyc_attention(pooled, fc1_t, fc2_t, fc2_b):
        # DyC_attention2d: GAP -> 1x1 conv (bias=False) -> relu -> 1x1 conv (bias) -> softmax(/T)
        gap = jnp.mean(pooled, axis=2)                                     # (bt, cin)
        hid = jnp.maximum(
            jnp.dot(gap, fc1_t, preferred_element_type=jnp.float32), 0.0)
        logits = jnp.dot(hid, fc2_t, preferred_element_type=jnp.float32) + fc2_b
        s = logits * (1.0 / TEMPERATURE)
        s = s - jnp.max(s, axis=1, keepdims=True)
        e = jnp.exp(s)
        return e / jnp.sum(e, axis=1, keepdims=True)                       # (bt, K)

    def dynamic_conv1x1(inp, att, dw_flat, db, cout, cin):
        # aggregate_weight = att @ weight.view(K, -1) -- one MXU matmul over K experts.
        agg_w = jnp.dot(att, dw_flat, preferred_element_type=jnp.float32)
        agg_w = agg_w.reshape(bt, cout, cin)
        agg_b = jnp.dot(att, db, preferred_element_type=jnp.float32)       # (bt, cout)
        out = jnp.einsum('boc,bcp->bop', agg_w, inp,
                         preferred_element_type=jnp.float32)
        return out + agg_b[:, :, None]

    # ---------- Dynamic_conv2d #1: C -> C//16, 1x1 ----------
    att1 = dyc_attention(y1, a1_fc1_ref[...], a1_fc2_ref[...], a1_fc2b_ref[...])
    z1 = jnp.maximum(
        dynamic_conv1x1(y1, att1, dw1_ref[...], b1_ref[...], c16, c), 0.0)

    # ---------- Dynamic_conv2d #2: C//16 -> C, 1x1 ----------
    att2 = dyc_attention(z1, a2_fc1_ref[...], a2_fc2_ref[...], a2_fc2b_ref[...])
    z2 = dynamic_conv1x1(z1, att2, dw2_ref[...], b2_ref[...], c, c16)       # (bt, c, 16)

    # ---------- AdaptiveAvgPool2d(1), sigmoid gate, x * gate ----------
    gate = 1.0 / (1.0 + jnp.exp(-jnp.mean(z2, axis=2)))                     # (bt, c) f32
    gate = gate.astype(o_ref.dtype)
    # Re-read the block right before the multiply (nothing full-size stays
    # live across the kernel); the multiply runs in the model dtype.
    o_ref[...] = (x_ref[...] * gate[:, :, None]).astype(o_ref.dtype)


def _tpu_vmem_capacity_bytes():
    # Hardware query used only for tiling decisions (never correctness).
    # Fall back to the smallest per-TC VMEM among target chips (v7x: 64 MiB).
    try:
        cap = int(getattr(pltpu.get_tpu_info(), "vmem_capacity_bytes", 0))
        if cap > 0:
            return cap
    except Exception:
        pass
    return 64 * 1024 * 1024


def _num_tensorcores_per_chip():
    # v7x exposes 2 TensorCores per chip (megacore); v5e/v6e expose 1.
    try:
        kind = jax.devices()[0].device_kind.lower()
        if "v7" in kind:
            return 2
    except Exception:
        pass
    return 1


def _const_spec(shape):
    nd = len(shape)
    index_map = lambda i, _n=nd: (0,) * _n
    if hasattr(pl, "Buffered"):
        # Constant block index -> a single VMEM buffer suffices (saves VMEM on v7x).
        return pl.BlockSpec(shape, index_map, pipeline_mode=pl.Buffered(1))
    return pl.BlockSpec(shape, index_map)


def _choose_bt(B, C, hw, itemsize, block_budget, two_cores):
    """Largest batch tile whose pipelined blocks fit the VMEM budget.

    On 2-TensorCore chips keep >= 2 grid steps (and an even count) so the
    "parallel" batch axis shards evenly across both cores; on 1-TC chips the
    whole batch may go in one step."""
    best = 1
    for bt in range(1, B + 1):
        if B % bt != 0:
            continue
        steps = B // bt
        if two_cores and B >= 2 and (steps < 2 or steps % 2 != 0):
            continue
        block_bytes = 4 * bt * C * hw * itemsize       # in + out, double-buffered
        scratch_bytes = 4 * bt * C * 16 * 4            # small f32 pooled intermediates
        if block_bytes + scratch_bytes <= block_budget:
            best = bt
    return best


def ca_attention(x, params):
    B, C, H, W = x.shape
    HW = H * W
    C16 = C // 16

    # Merge the trailing spatial dims only -> free reshape, no extra HBM copy,
    # and the (bt, C, HW) block needs no lane padding (full trailing dims).
    x3d = x.reshape(B, C, HW)

    param_list = [
        params["pool4"].astype(x.dtype),   # model-dtype pool matrix -> native MXU operand
        params["a1_fc1_t"], params["a1_fc2_t"], params["a1_fc2_b"],
        params["dyn1_w_flat"], params["dyn1_b"],
        params["a2_fc1_t"], params["a2_fc2_t"], params["a2_fc2_b"],
        params["dyn2_w_flat"], params["dyn2_b"],
    ]
    param_bytes = sum(int(np.prod(p.shape)) * p.dtype.itemsize for p in param_list)

    vmem_cap = _tpu_vmem_capacity_bytes()
    # ~96 MiB budget on 128 MiB chips (v5e/v6e), ~48 MiB on 64 MiB chips (v7x).
    vmem_limit = min(int(vmem_cap * 0.75), vmem_cap - 8 * 1024 * 1024)
    block_budget = vmem_limit - param_bytes - _HEADROOM_BYTES
    two_cores = _num_tensorcores_per_chip() > 1
    bt = _choose_bt(B, C, HW, x.dtype.itemsize, block_budget, two_cores)

    kernel = functools.partial(_ca_attention_kernel, bt=bt, c=C, c16=C16)
    block_spec = pl.BlockSpec((bt, C, HW), lambda i: (i, 0, 0))

    out3d = pl.pallas_call(
        kernel,
        out_shape=jax.ShapeDtypeStruct((B, C, HW), x.dtype),
        grid=(B // bt,),
        in_specs=[block_spec] + [_const_spec(p.shape) for p in param_list],
        out_specs=pl.BlockSpec((bt, C, HW), lambda i: (i, 0, 0)),
        compiler_params=pltpu.CompilerParams(
            dimension_semantics=("parallel",),
            vmem_limit_bytes=vmem_limit),
    )(x3d, *param_list)

    return out3d.reshape(B, C, H, W)


def init_params(key, channel, H, W, K=K_EXPERTS, ratio=RATIO):
    C = channel
    C16 = channel // 16                       # CA_attention hardcodes // 16
    h1 = int(C * ratio) + 1 if C != 3 else K  # DyC_attention2d hidden size
    h2 = int(C16 * ratio) + 1 if C16 != 3 else K
    keys = jax.random.split(key, 10)

    def rnd(k, shape, scale=0.1):
        return (scale * jax.random.normal(k, shape)).astype(jnp.float32)

    return dict(
        pool4=_adaptive_pool_matrix(H, W, 4, 4),             # (H*W, 16)
        # Dynamic_conv2d #1 (C -> C//16, 1x1, K experts); expert weights
        # pre-flattened and attention fc weights pre-transposed host-side.
        a1_fc1_t=rnd(keys[0], (C, h1)),
        a1_fc2_t=rnd(keys[1], (h1, K)),
        a1_fc2_b=rnd(keys[2], (1, K)),
        dyn1_w_flat=rnd(keys[3], (K, C16 * C)),              # (K, out*in)
        dyn1_b=rnd(keys[4], (K, C16)),                       # (K, out) as in torch
        # Dynamic_conv2d #2 (C//16 -> C, 1x1, K experts)
        a2_fc1_t=rnd(keys[5], (C16, h2)),
        a2_fc2_t=rnd(keys[6], (h2, K)),
        a2_fc2_b=rnd(keys[7], (1, K)),
        dyn2_w_flat=rnd(keys[8], (K, C * C16)),
        dyn2_b=rnd(keys[9], (K, C)),
    )


def ca_attention_reference(x, params):
    """Pure-JAX f32 reference with identical semantics (for validation)."""
    B, C, H, W = x.shape
    HW = H * W
    C16 = C // 16
    xf = x.astype(jnp.float32).reshape(B, C, HW)
    pm = params["pool4"]
    y1 = jnp.einsum('bch,hp->bcp', xf, pm)

    def attention(pooled, fc1_t, fc2_t, fc2_b):
        gap = jnp.mean(pooled, axis=2)
        hid = jnp.maximum(gap @ fc1_t, 0.0)
        logits = hid @ fc2_t + fc2_b
        return jax.nn.softmax(logits / TEMPERATURE, axis=1)

    def dyn(inp, att, w_flat, b, cout, cin):
        w = (att @ w_flat).reshape(B, cout, cin)
        bb = att @ b
        return jnp.einsum('boc,bcp->bop', w, inp) + bb[:, :, None]

    a1 = attention(y1, params["a1_fc1_t"], params["a1_fc2_t"], params["a1_fc2_b"])
    z1 = jnp.maximum(dyn(y1, a1, params["dyn1_w_flat"], params["dyn1_b"], C16, C), 0.0)
    a2 = attention(z1, params["a2_fc1_t"], params["a2_fc2_t"], params["a2_fc2_b"])
    z2 = dyn(z1, a2, params["dyn2_w_flat"], params["dyn2_b"], C, C16)
    gate = jax.nn.sigmoid(jnp.mean(z2, axis=2, keepdims=True))
    return (xf * gate).reshape(B, C, H, W)


if __name__ == "__main__":
    key = jax.random.PRNGKey(0)
    kx, kp = jax.random.split(key)
    B, C, H, W = 4, 32, 16, 16
    x = jax.random.normal(kx, (B, C, H, W), dtype=jnp.float32).astype(jnp.bfloat16)
    params = init_params(kp, C, H, W)

    out = ca_attention(x, params)
    jax.block_until_ready(out)

    assert out.shape == (B, C, H, W)
    assert out.dtype == x.dtype
    assert bool(jnp.all(jnp.isfinite(out)))
    ref = ca_attention_reference(x, params)
    err = float(jnp.max(jnp.abs(out.astype(jnp.float32) - ref)))
    assert err < 5e-2, f"max abs err {err}"
    print("KERNEL_OK")
</pallas_src>

<mosaic_0001>
module attributes {stable_mosaic.version = 11 : i64} {
  func.func @_ca_attention_kernel(%arg0: i32, %arg1: memref<4x32x256xbf16, #tpu.memory_space<vmem>>, %arg2: memref<256x16xbf16, #tpu.memory_space<vmem>>, %arg3: memref<32x9xf32, #tpu.memory_space<vmem>>, %arg4: memref<9x4xf32, #tpu.memory_space<vmem>>, %arg5: memref<1x4xf32, #tpu.memory_space<vmem>>, %arg6: memref<4x64xf32, #tpu.memory_space<vmem>>, %arg7: memref<4x2xf32, #tpu.memory_space<vmem>>, %arg8: memref<2x1xf32, #tpu.memory_space<vmem>>, %arg9: memref<1x4xf32, #tpu.memory_space<vmem>>, %arg10: memref<1x4xf32, #tpu.memory_space<vmem>>, %arg11: memref<4x64xf32, #tpu.memory_space<vmem>>, %arg12: memref<4x32xf32, #tpu.memory_space<vmem>>, %arg13: memref<4x32x256xbf16, #tpu.memory_space<vmem>>) attributes {dimension_semantics = [#tpu.dimension_semantics<parallel>], iteration_bounds = array<i64: 1>, scalar_prefetch = 0 : i64, scratch_operands = 0 : i64, tpu.core_type = #tpu.core_type<tc>, window_params = [{transform_indices = @transform_0, window_bounds = array<i64: 4, 32, 256>}, {pipeline_mode = #tpu.pipeline_mode<synchronous>, transform_indices = @transform_1, window_bounds = array<i64: 256, 16>}, {pipeline_mode = #tpu.pipeline_mode<synchronous>, transform_indices = @transform_2, window_bounds = array<i64: 32, 9>}, {pipeline_mode = #tpu.pipeline_mode<synchronous>, transform_indices = @transform_3, window_bounds = array<i64: 9, 4>}, {pipeline_mode = #tpu.pipeline_mode<synchronous>, transform_indices = @transform_4, window_bounds = array<i64: 1, 4>}, {pipeline_mode = #tpu.pipeline_mode<synchronous>, transform_indices = @transform_5, window_bounds = array<i64: 4, 64>}, {pipeline_mode = #tpu.pipeline_mode<synchronous>, transform_indices = @transform_6, window_bounds = array<i64: 4, 2>}, {pipeline_mode = #tpu.pipeline_mode<synchronous>, transform_indices = @transform_7, window_bounds = array<i64: 2, 1>}, {pipeline_mode = #tpu.pipeline_mode<synchronous>, transform_indices = @transform_8, window_bounds = array<i64: 1, 4>}, {pipeline_mode = #tpu.pipeline_mode<synchronous>, transform_indices = @transform_9, window_bounds = array<i64: 1, 4>}, {pipeline_mode = #tpu.pipeline_mode<synchronous>, transform_indices = @transform_10, window_bounds = array<i64: 4, 64>}, {pipeline_mode = #tpu.pipeline_mode<synchronous>, transform_indices = @transform_11, window_bounds = array<i64: 4, 32>}, {transform_indices = @transform_12, window_bounds = array<i64: 4, 32, 256>}]} {
    %c0 = arith.constant 0 : index
    %c0_0 = arith.constant 0 : index
    %c0_1 = arith.constant 0 : index
    %0 = vector.load %arg1[%c0, %c0_0, %c0_1] : memref<4x32x256xbf16, #tpu.memory_space<vmem>>, vector<4x32x256xbf16>
    %1 = vector.shape_cast %0 : vector<4x32x256xbf16> to vector<128x256xbf16>
    %c0_2 = arith.constant 0 : index
    %c0_3 = arith.constant 0 : index
    %2 = vector.load %arg2[%c0_2, %c0_3] : memref<256x16xbf16, #tpu.memory_space<vmem>>, vector<256x16xbf16>
    %cst = arith.constant dense<0.000000e+00> : vector<128x16xf32>
    %3 = tpu.matmul %1, %2, %cst {dimension_numbers = #tpu.dot_dimension_numbers<[1], [0], [0], [1], [0, 0, 1, 1], [], []>} : vector<128x256xbf16>, vector<256x16xbf16>, vector<128x16xf32> -> vector<128x16xf32>
    %4 = vector.shape_cast %3 : vector<128x16xf32> to vector<4x32x16xf32>
    %c0_4 = arith.constant 0 : index
    %c0_5 = arith.constant 0 : index
    %5 = vector.load %arg3[%c0_4, %c0_5] : memref<32x9xf32, #tpu.memory_space<vmem>>, vector<32x9xf32>
    %c0_6 = arith.constant 0 : index
    %c0_7 = arith.constant 0 : index
    %6 = vector.load %arg4[%c0_6, %c0_7] : memref<9x4xf32, #tpu.memory_space<vmem>>, vector<9x4xf32>
    %c0_8 = arith.constant 0 : index
    %c0_9 = arith.constant 0 : index
    %7 = vector.load %arg5[%c0_8, %c0_9] : memref<1x4xf32, #tpu.memory_space<vmem>>, vector<1x4xf32>
    %cst_10 = arith.constant dense<0.000000e+00> : vector<4x32xf32>
    %8 = vector.multi_reduction <add>, %4, %cst_10 [2] : vector<4x32x16xf32> to vector<4x32xf32>
    %cst_11 = arith.constant 1.600000e+01 : f32
    %9 = vector.broadcast %cst_11 : f32 to vector<4x32xf32>
    %10 = arith.divf %8, %9 : vector<4x32xf32>
    %cst_12 = arith.constant dense<0.000000e+00> : vector<4x9xf32>
    %11 = tpu.matmul %10, %5, %cst_12 {dimension_numbers = #tpu.dot_dimension_numbers<[1], [0], [0], [1], [0, 0, 1, 1], [], []>} : vector<4x32xf32>, vector<32x9xf32>, vector<4x9xf32> -> vector<4x9xf32>
    %cst_13 = arith.constant 0.000000e+00 : f32
    %12 = vector.broadcast %cst_13 : f32 to vector<4x9xf32>
    %13 = arith.maximumf %11, %12 : vector<4x9xf32>
    %cst_14 = arith.constant dense<0.000000e+00> : vector<4x4xf32>
    %14 = tpu.matmul %13, %6, %cst_14 {dimension_numbers = #tpu.dot_dimension_numbers<[1], [0], [0], [1], [0, 0, 1, 1], [], []>} : vector<4x9xf32>, vector<9x4xf32>, vector<4x4xf32> -> vector<4x4xf32>
    %15 = vector.broadcast %7 : vector<1x4xf32> to vector<4x4xf32>
    %16 = arith.addf %14, %15 : vector<4x4xf32>
    %cst_15 = arith.constant 0.0294117648 : f32
    %17 = vector.broadcast %cst_15 : f32 to vector<4x4xf32>
    %18 = arith.mulf %16, %17 : vector<4x4xf32>
    %cst_16 = arith.constant dense<0xFF800000> : vector<4xf32>
    %19 = vector.multi_reduction <maximumf>, %18, %cst_16 [1] : vector<4x4xf32> to vector<4xf32>
    %20 = vector.shape_cast %19 : vector<4xf32> to vector<4x1xf32>
    %21 = vector.broadcast %20 : vector<4x1xf32> to vector<4x4xf32>
    %22 = arith.subf %18, %21 : vector<4x4xf32>
    %23 = math.exp %22 : vector<4x4xf32>
    %cst_17 = arith.constant dense<0.000000e+00> : vector<4xf32>
    %24 = vector.multi_reduction <add>, %23, %cst_17 [1] : vector<4x4xf32> to vector<4xf32>
    %25 = vector.shape_cast %24 : vector<4xf32> to vector<4x1xf32>
    %26 = vector.broadcast %25 : vector<4x1xf32> to vector<4x4xf32>
    %27 = arith.divf %23, %26 : vector<4x4xf32>
    %c0_18 = arith.constant 0 : index
    %c0_19 = arith.constant 0 : index
    %28 = vector.load %arg6[%c0_18, %c0_19] : memref<4x64xf32, #tpu.memory_space<vmem>>, vector<4x64xf32>
    %c0_20 = arith.constant 0 : index
    %c0_21 = arith.constant 0 : index
    %29 = vector.load %arg7[%c0_20, %c0_21] : memref<4x2xf32, #tpu.memory_space<vmem>>, vector<4x2xf32>
    %cst_22 = arith.constant dense<0.000000e+00> : vector<4x64xf32>
    %30 = tpu.matmul %27, %28, %cst_22 {dimension_numbers = #tpu.dot_dimension_numbers<[1], [0], [0], [1], [0, 0, 1, 1], [], []>} : vector<4x4xf32>, vector<4x64xf32>, vector<4x64xf32> -> vector<4x64xf32>
    %31 = vector.shape_cast %30 : vector<4x64xf32> to vector<4x2x32xf32>
    %cst_23 = arith.constant dense<0.000000e+00> : vector<4x2xf32>
    %32 = tpu.matmul %27, %29, %cst_23 {dimension_numbers = #tpu.dot_dimension_numbers<[1], [0], [0], [1], [0, 0, 1, 1], [], []>} : vector<4x4xf32>, vector<4x2xf32>, vector<4x2xf32> -> vector<4x2xf32>
    "tpu.trace_start"() <{level = 10 : i32, message = "boc,bcp->bop"}> : () -> ()
    %cst_24 = arith.constant dense<0.000000e+00> : vector<4x2x16xf32>
    %33 = tpu.matmul %31, %4, %cst_24 {dimension_numbers = #tpu.dot_dimension_numbers<[2], [1], [1], [2], [0, 0, 0, 1, 1, 2], [0], [0]>} : vector<4x2x32xf32>, vector<4x32x16xf32>, vector<4x2x16xf32> -> vector<4x2x16xf32>
    "tpu.trace_stop"() : () -> ()
    %34 = vector.shape_cast %32 : vector<4x2xf32> to vector<4x2x1xf32>
    %35 = vector.broadcast %34 : vector<4x2x1xf32> to vector<4x2x16xf32>
    %36 = arith.addf %33, %35 : vector<4x2x16xf32>
    %cst_25 = arith.constant 0.000000e+00 : f32
    %37 = vector.broadcast %cst_25 : f32 to vector<4x2x16xf32>
    %38 = arith.maximumf %36, %37 : vector<4x2x16xf32>
    %c0_26 = arith.constant 0 : index
    %c0_27 = arith.constant 0 : index
    %39 = vector.load %arg8[%c0_26, %c0_27] : memref<2x1xf32, #tpu.memory_space<vmem>>, vector<2x1xf32>
    %c0_28 = arith.constant 0 : index
    %c0_29 = arith.constant 0 : index
    %40 = vector.load %arg9[%c0_28, %c0_29] : memref<1x4xf32, #tpu.memory_space<vmem>>, vector<1x4xf32>
    %c0_30 = arith.constant 0 : index
    %c0_31 = arith.constant 0 : index
    %41 = vector.load %arg10[%c0_30, %c0_31] : memref<1x4xf32, #tpu.memory_space<vmem>>, vector<1x4xf32>
    %cst_32 = arith.constant dense<0.000000e+00> : vector<4x2xf32>
    %42 = vector.multi_reduction <add>, %38, %cst_32 [2] : vector<4x2x16xf32> to vector<4x2xf32>
    %cst_33 = arith.constant 1.600000e+01 : f32
    %43 = vector.broadcast %cst_33 : f32 to vector<4x2xf32>
    %44 = arith.divf %42, %43 : vector<4x2xf32>
    %cst_34 = arith.constant dense<0.000000e+00> : vector<4x1xf32>
    %45 = tpu.matmul %44, %39, %cst_34 {dimension_numbers = #tpu.dot_dimension_numbers<[1], [0], [0], [1], [0, 0, 1, 1], [], []>} : vector<4x2xf32>, vector<2x1xf32>, vector<4x1xf32> -> vector<4x1xf32>
    %cst_35 = arith.constant 0.000000e+00 : f32
    %46 = vector.broadcast %cst_35 : f32 to vector<4x1xf32>
    %47 = arith.maximumf %45, %46 : vector<4x1xf32>
    %cst_36 = arith.constant dense<0.000000e+00> : vector<4x4xf32>
    %48 = tpu.matmul %47, %40, %cst_36 {dimension_numbers = #tpu.dot_dimension_numbers<[1], [0], [0], [1], [0, 0, 1, 1], [], []>} : vector<4x1xf32>, vector<1x4xf32>, vector<4x4xf32> -> vector<4x4xf32>
    %49 = vector.broadcast %41 : vector<1x4xf32> to vector<4x4xf32>
    %50 = arith.addf %48, %49 : vector<4x4xf32>
    %cst_37 = arith.constant 0.0294117648 : f32
    %51 = vector.broadcast %cst_37 : f32 to vector<4x4xf32>
    %52 = arith.mulf %50, %51 : vector<4x4xf32>
    %cst_38 = arith.constant dense<0xFF800000> : vector<4xf32>
    %53 = vector.multi_reduction <maximumf>, %52, %cst_38 [1] : vector<4x4xf32> to vector<4xf32>
    %54 = vector.shape_cast %53 : vector<4xf32> to vector<4x1xf32>
    %55 = vector.broadcast %54 : vector<4x1xf32> to vector<4x4xf32>
    %56 = arith.subf %52, %55 : vector<4x4xf32>
    %57 = math.exp %56 : vector<4x4xf32>
    %cst_39 = arith.constant dense<0.000000e+00> : vector<4xf32>
    %58 = vector.multi_reduction <add>, %57, %cst_39 [1] : vector<4x4xf32> to vector<4xf32>
    %59 = vector.shape_cast %58 : vector<4xf32> to vector<4x1xf32>
    %60 = vector.broadcast %59 : vector<4x1xf32> to vector<4x4xf32>
    %61 = arith.divf %57, %60 : vector<4x4xf32>
    %c0_40 = arith.constant 0 : index
    %c0_41 = arith.constant 0 : index
    %62 = vector.load %arg11[%c0_40, %c0_41] : memref<4x64xf32, #tpu.memory_space<vmem>>, vector<4x64xf32>
    %c0_42 = arith.constant 0 : index
    %c0_43 = arith.constant 0 : index
    %63 = vector.load %arg12[%c0_42, %c0_43] : memref<4x32xf32, #tpu.memory_space<vmem>>, vector<4x32xf32>
    %cst_44 = arith.constant dense<0.000000e+00> : vector<4x64xf32>
    %64 = tpu.matmul %61, %62, %cst_44 {dimension_numbers = #tpu.dot_dimension_numbers<[1], [0], [0], [1], [0, 0, 1, 1], [], []>} : vector<4x4xf32>, vector<4x64xf32>, vector<4x64xf32> -> vector<4x64xf32>
    %65 = vector.shape_cast %64 : vector<4x64xf32> to vector<4x32x2xf32>
    %cst_45 = arith.constant dense<0.000000e+00> : vector<4x32xf32>
    %66 = tpu.matmul %61, %63, %cst_45 {dimension_numbers = #tpu.dot_dimension_numbers<[1], [0], [0], [1], [0, 0, 1, 1], [], []>} : vector<4x4xf32>, vector<4x32xf32>, vector<4x32xf32> -> vector<4x32xf32>
    "tpu.trace_start"() <{level = 10 : i32, message = "boc,bcp->bop"}> : () -> ()
    %cst_46 = arith.constant dense<0.000000e+00> : vector<4x32x16xf32>
    %67 = tpu.matmul %65, %38, %cst_46 {dimension_numbers = #tpu.dot_dimension_numbers<[2], [1], [1], [2], [0, 0, 0, 1, 1, 2], [0], [0]>} : vector<4x32x2xf32>, vector<4x2x16xf32>, vector<4x32x16xf32> -> vector<4x32x16xf32>
    "tpu.trace_stop"() : () -> ()
    %68 = vector.shape_cast %66 : vector<4x32xf32> to vector<4x32x1xf32>
    %69 = vector.broadcast %68 : vector<4x32x1xf32> to vector<4x32x16xf32>
    %70 = arith.addf %67, %69 : vector<4x32x16xf32>
    %cst_47 = arith.constant dense<0.000000e+00> : vector<4x32xf32>
    %71 = vector.multi_reduction <add>, %70, %cst_47 [2] : vector<4x32x16xf32> to vector<4x32xf32>
    %cst_48 = arith.constant 1.600000e+01 : f32
    %72 = vector.broadcast %cst_48 : f32 to vector<4x32xf32>
    %73 = arith.divf %71, %72 : vector<4x32xf32>
    %cst_49 = arith.constant 0.000000e+00 : f32
    %74 = vector.broadcast %cst_49 : f32 to vector<4x32xf32>
    %75 = arith.subf %74, %73 : vector<4x32xf32>
    %76 = math.exp %75 : vector<4x32xf32>
    %cst_50 = arith.constant 1.000000e+00 : f32
    %77 = vector.broadcast %cst_50 : f32 to vector<4x32xf32>
    %78 = arith.addf %77, %76 : vector<4x32xf32>
    %cst_51 = arith.constant 1.000000e+00 : f32
    %79 = vector.broadcast %cst_51 : f32 to vector<4x32xf32>
    %80 = arith.divf %79, %78 : vector<4x32xf32>
    %81 = arith.truncf %80 : vector<4x32xf32> to vector<4x32xbf16>
    %c0_52 = arith.constant 0 : index
    %c0_53 = arith.constant 0 : index
    %c0_54 = arith.constant 0 : index
    %82 = vector.load %arg1[%c0_52, %c0_53, %c0_54] : memref<4x32x256xbf16, #tpu.memory_space<vmem>>, vector<4x32x256xbf16>
    %83 = vector.shape_cast %81 : vector<4x32xbf16> to vector<4x32x1xbf16>
    %84 = vector.broadcast %83 : vector<4x32x1xbf16> to vector<4x32x256xbf16>
    %85 = arith.mulf %82, %84 : vector<4x32x256xbf16>
    %c0_55 = arith.constant 0 : index
    %c0_56 = arith.constant 0 : index
    %c0_57 = arith.constant 0 : index
    %86 = vector.load %arg13[%c0_55, %c0_56, %c0_57] : memref<4x32x256xbf16, #tpu.memory_space<vmem>>, vector<4x32x256xbf16>
    tpu.vector_store %arg13[%c0_55, %c0_56, %c0_57], %85 {strides = array<i32>} : memref<4x32x256xbf16, #tpu.memory_space<vmem>>, vector<4x32x256xbf16>,
    return
  }
  func.func @transform_0(%arg0: i32) -> (i32, i32, i32) {
    %c0_i32 = arith.constant 0 : i32
    %c0_i32_0 = arith.constant 0 : i32
    %c0_i32_1 = arith.constant 0 : i32
    return %arg0, %c0_i32, %c0_i32_0 : i32, i32, i32
  }
  func.func @transform_1(%arg0: i32) -> (i32, i32) {
    %c0_i32 = arith.constant 0 : i32
    %c0_i32_0 = arith.constant 0 : i32
    %c0_i32_1 = arith.constant 0 : i32
    return %c0_i32, %c0_i32_0 : i32, i32
  }
  func.func @transform_2(%arg0: i32) -> (i32, i32) {
    %c0_i32 = arith.constant 0 : i32
    %c0_i32_0 = arith.constant 0 : i32
    %c0_i32_1 = arith.constant 0 : i32
    return %c0_i32, %c0_i32_0 : i32, i32
  }
  func.func @transform_3(%arg0: i32) -> (i32, i32) {
    %c0_i32 = arith.constant 0 : i32
    %c0_i32_0 = arith.constant 0 : i32
    %c0_i32_1 = arith.constant 0 : i32
    return %c0_i32, %c0_i32_0 : i32, i32
  }
  func.func @transform_4(%arg0: i32) -> (i32, i32) {
    %c0_i32 = arith.constant 0 : i32
    %c0_i32_0 = arith.constant 0 : i32
    %c0_i32_1 = arith.constant 0 : i32
    return %c0_i32, %c0_i32_0 : i32, i32
  }
  func.func @transform_5(%arg0: i32) -> (i32, i32) {
    %c0_i32 = arith.constant 0 : i32
    %c0_i32_0 = arith.constant 0 : i32
    %c0_i32_1 = arith.constant 0 : i32
    return %c0_i32, %c0_i32_0 : i32, i32
  }
  func.func @transform_6(%arg0: i32) -> (i32, i32) {
    %c0_i32 = arith.constant 0 : i32
    %c0_i32_0 = arith.constant 0 : i32
    %c0_i32_1 = arith.constant 0 : i32
    return %c0_i32, %c0_i32_0 : i32, i32
  }
  func.func @transform_7(%arg0: i32) -> (i32, i32) {
    %c0_i32 = arith.constant 0 : i32
    %c0_i32_0 = arith.constant 0 : i32
    %c0_i32_1 = arith.constant 0 : i32
    return %c0_i32, %c0_i32_0 : i32, i32
  }
  func.func @transform_8(%arg0: i32) -> (i32, i32) {
    %c0_i32 = arith.constant 0 : i32
    %c0_i32_0 = arith.constant 0 : i32
    %c0_i32_1 = arith.constant 0 : i32
    return %c0_i32, %c0_i32_0 : i32, i32
  }
  func.func @transform_9(%arg0: i32) -> (i32, i32) {
    %c0_i32 = arith.constant 0 : i32
    %c0_i32_0 = arith.constant 0 : i32
    %c0_i32_1 = arith.constant 0 : i32
    return %c0_i32, %c0_i32_0 : i32, i32
  }
  func.func @transform_10(%arg0: i32) -> (i32, i32) {
    %c0_i32 = arith.constant 0 : i32
    %c0_i32_0 = arith.constant 0 : i32
    %c0_i32_1 = arith.constant 0 : i32
    return %c0_i32, %c0_i32_0 : i32, i32
  }
  func.func @transform_11(%arg0: i32) -> (i32, i32) {
    %c0_i32 = arith.constant 0 : i32
    %c0_i32_0 = arith.constant 0 : i32
    %c0_i32_1 = arith.constant 0 : i32
    return %c0_i32, %c0_i32_0 : i32, i32
  }
  func.func @transform_12(%arg0: i32) -> (i32, i32, i32) {
    %c0_i32 = arith.constant 0 : i32
    %c0_i32_0 = arith.constant 0 : i32
    %c0_i32_1 = arith.constant 0 : i32
    return %arg0, %c0_i32, %c0_i32_0 : i32, i32, i32
  }
}

</mosaic_0001>

<llo_original>
// kernel: tpu_custom_call.1
$region0: #{tpu_custom_call.1}
  #allocation0 [shape = 'u32[]', space=smem, size = 0x4, offset = 0x4, fixed_abs, tag = 'smem constant byte address 0x4 - core index']
  #allocation1 [shape = 'u32[144,128]{1,0:T(1,128)}', space=vmem, size = 0x12000, scoped, tag = 'internal scratch']
  %s0 = inlined_call_operand.vmem [shape: bf16[4,32,256], index: 0, kind: input, shape index: {}]
  %s1 = inlined_call_operand.vmem [shape: bf16[256,16], index: 1, kind: input, shape index: {}]
  %s2 = inlined_call_operand.vmem [shape: f32[32,9], index: 2, kind: input, shape index: {}]
  %s3 = inlined_call_operand.vmem [shape: f32[9,4], index: 3, kind: input, shape index: {}]
  %s4 = inlined_call_operand.vmem [shape: f32[1,4], index: 4, kind: input, shape index: {}]
  %s5 = inlined_call_operand.vmem [shape: f32[4,64], index: 5, kind: input, shape index: {}]
  %s6 = inlined_call_operand.vmem [shape: f32[4,2], index: 6, kind: input, shape index: {}]
  %s7 = inlined_call_operand.vmem [shape: f32[2,1], index: 7, kind: input, shape index: {}]
  %s8 = inlined_call_operand.vmem [shape: f32[1,4], index: 8, kind: input, shape index: {}]
  %s9 = inlined_call_operand.vmem [shape: f32[1,4], index: 9, kind: input, shape index: {}]
  %s10 = inlined_call_operand.vmem [shape: f32[4,64], index: 10, kind: input, shape index: {}]
  %s11 = inlined_call_operand.vmem [shape: f32[4,32], index: 11, kind: input, shape index: {}]
  %s12 = inlined_call_operand.hbm [shape: bf16[4,32,256], index: 12, kind: output, shape index: {}]
  %s13 = sld [smem:[#allocation0]]
  $region58: #{tpu_custom_call.1} parent=0
    _
  %s15 = ssub.s32 1, %s13
  %s16 = scalar_select 0, %s15, %s13
  $region1: #{tpu_custom_call.1} parent=0
    #allocation2 [shape = 'u8[65536]{0}', space=vmem, size = 0x10000, scoped, tag = 'output window, operand 0, single buffered']
    #allocation3 [shape = 's32[1]{0}', space=sflag, size = 0x4, scoped, tag = 'scoped memory for tpu_custom_call.1']
    %17 = vsyncpa [#allocation3], 0
    // Predicated region
    $region2: #{tpu_custom_call.1} parent=1 // pred_check
      _
    $region3: #{tpu_custom_call.1} parent=1 // pred_check_branch
      %19 = sbr.rel (0) target = $region5
    $region4: #{tpu_custom_call.1} parent=1 // pred_region
      _
    $region5: #{tpu_custom_call.1} parent=1 // pred_fallthru
      _
    // Predicated region
    $region6: #{tpu_custom_call.1} parent=1 // pred_check
      _
    $region7: #{tpu_custom_call.1} parent=1 // pred_check_branch
      %21 = sbr.rel (0) target = $region9
    $region8: #{tpu_custom_call.1} parent=1 // pred_region
      _
    $region9: #{tpu_custom_call.1} parent=1 // pred_fallthru
      _
    // Predicated region
    $region10: #{tpu_custom_call.1} parent=1 // pred_check
      _
    $region11: #{tpu_custom_call.1} parent=1 // pred_check_branch
      %23 = sbr.rel (0) target = $region13
    $region12: #{tpu_custom_call.1} parent=1 // pred_region
      _
    $region13: #{tpu_custom_call.1} parent=1 // pred_fallthru
      _
    // Predicated region
    $region14: #{tpu_custom_call.1} parent=1 // pred_check
      _
    $region15: #{tpu_custom_call.1} parent=1 // pred_check_branch
      %25 = sbr.rel (0) target = $region17
    $region16: #{tpu_custom_call.1} parent=1 // pred_region
      _
    $region17: #{tpu_custom_call.1} parent=1 // pred_fallthru
      _
    // Predicated region
    $region18: #{tpu_custom_call.1} parent=1 // pred_check
      _
    $region19: #{tpu_custom_call.1} parent=1 // pred_check_branch
      %27 = sbr.rel (0) target = $region21
    $region20: #{tpu_custom_call.1} parent=1 // pred_region
      _
    $region21: #{tpu_custom_call.1} parent=1 // pred_fallthru
      _
    // Predicated region
    $region22: #{tpu_custom_call.1} parent=1 // pred_check
      _
    $region23: #{tpu_custom_call.1} parent=1 // pred_check_branch
      %29 = sbr.rel (0) target = $region25
    $region24: #{tpu_custom_call.1} parent=1 // pred_region
      _
    $region25: #{tpu_custom_call.1} parent=1 // pred_fallthru
      _
    // Predicated region
    $region26: #{tpu_custom_call.1} parent=1 // pred_check
      _
    $region27: #{tpu_custom_call.1} parent=1 // pred_check_branch
      %31 = sbr.rel (0) target = $region29
    $region28: #{tpu_custom_call.1} parent=1 // pred_region
      _
    $region29: #{tpu_custom_call.1} parent=1 // pred_fallthru
      _
    // Predicated region
    $region30: #{tpu_custom_call.1} parent=1 // pred_check
      _
    $region31: #{tpu_custom_call.1} parent=1 // pred_check_branch
      %33 = sbr.rel (0) target = $region33
    $region32: #{tpu_custom_call.1} parent=1 // pred_region
      _
    $region33: #{tpu_custom_call.1} parent=1 // pred_fallthru
      _
    // Predicated region
    $region34: #{tpu_custom_call.1} parent=1 // pred_check
      _
    $region35: #{tpu_custom_call.1} parent=1 // pred_check_branch
      %35 = sbr.rel (0) target = $region37
    $region36: #{tpu_custom_call.1} parent=1 // pred_region
      _
    $region37: #{tpu_custom_call.1} parent=1 // pred_fallthru
      _
    // Predicated region
    $region38: #{tpu_custom_call.1} parent=1 // pred_check
      _
    $region39: #{tpu_custom_call.1} parent=1 // pred_check_branch
      %37 = sbr.rel (0) target = $region41
    $region40: #{tpu_custom_call.1} parent=1 // pred_region
      _
    $region41: #{tpu_custom_call.1} parent=1 // pred_fallthru
      _
    // Predicated region
    $region42: #{tpu_custom_call.1} parent=1 // pred_check
      _
    $region43: #{tpu_custom_call.1} parent=1 // pred_check_branch
      %39 = sbr.rel (0) target = $region45
    $region44: #{tpu_custom_call.1} parent=1 // pred_region
      _
    $region45: #{tpu_custom_call.1} parent=1 // pred_fallthru
      _
    // Predicated region
    $region46: #{tpu_custom_call.1} parent=1 // pred_check
      _
    $region47: #{tpu_custom_call.1} parent=1 // pred_check_branch
      %41 = sbr.rel (0) target = $region49
    $region48: #{tpu_custom_call.1} parent=1 // pred_region
      _
    $region49: #{tpu_custom_call.1} parent=1 // pred_fallthru
      _
    %v43 = vld [vmem:[%s0] sm:$0xff]
    %v44 = vld [vmem:[%s0 + $0x8] sm:$0xff]
    %v45 = vld [vmem:[%s0 + $0x10] sm:$0xff]
    %v46 = vld [vmem:[%s0 + $0x18] sm:$0xff]
    %v47 = vld [vmem:[%s0 + $0x20] sm:$0xff]
    %v48 = vld [vmem:[%s0 + $0x28] sm:$0xff]
    %v49 = vld [vmem:[%s0 + $0x30] sm:$0xff]
    %v50 = vld [vmem:[%s0 + $0x38] sm:$0xff]
    %v51 = vld [vmem:[%s0 + $0x40] sm:$0xff]
    %v52 = vld [vmem:[%s0 + $0x48] sm:$0xff]
    %v53 = vld [vmem:[%s0 + $0x50] sm:$0xff]
    %v54 = vld [vmem:[%s0 + $0x58] sm:$0xff]
    %v55 = vld [vmem:[%s0 + $0x60] sm:$0xff]
    %v56 = vld [vmem:[%s0 + $0x68] sm:$0xff]
    %v57 = vld [vmem:[%s0 + $0x70] sm:$0xff]
    %v58 = vld [vmem:[%s0 + $0x78] sm:$0xff]
    %v59 = vld [vmem:[%s1] sm:$0xf]
    %v60 = vld [vmem:[%s1 + $0x4] sm:$0xf]
    %v61 = vld [vmem:[%s1 + $0x8] sm:$0xf]
    %v62 = vld [vmem:[%s1 + $0xc] sm:$0xf]
    %v63 = vld [vmem:[%s1 + $0x10] sm:$0xf]
    %v64 = vld [vmem:[%s1 + $0x14] sm:$0xf]
    %v65 = vld [vmem:[%s1 + $0x18] sm:$0xf]
    %v66 = vld [vmem:[%s1 + $0x1c] sm:$0xf]
    %v67 = vld [vmem:[%s1 + $0x20] sm:$0xf]
    %v68 = vld [vmem:[%s1 + $0x24] sm:$0xf]
    %v69 = vld [vmem:[%s1 + $0x28] sm:$0xf]
    %v70 = vld [vmem:[%s1 + $0x2c] sm:$0xf]
    %v71 = vld [vmem:[%s1 + $0x30] sm:$0xf]
    %v72 = vld [vmem:[%s1 + $0x34] sm:$0xf]
    %v73 = vld [vmem:[%s1 + $0x38] sm:$0xf]
    %v74 = vld [vmem:[%s1 + $0x3c] sm:$0xf]
    %v75 = vld [vmem:[%s1 + $0x40] sm:$0xf]
    %v76 = vld [vmem:[%s1 + $0x44] sm:$0xf]
    %v77 = vld [vmem:[%s1 + $0x48] sm:$0xf]
    %v78 = vld [vmem:[%s1 + $0x4c] sm:$0xf]
    %v79 = vld [vmem:[%s1 + $0x50] sm:$0xf]
    %v80 = vld [vmem:[%s1 + $0x54] sm:$0xf]
    %v81 = vld [vmem:[%s1 + $0x58] sm:$0xf]
    %v82 = vld [vmem:[%s1 + $0x5c] sm:$0xf]
    %v83 = vld [vmem:[%s1 + $0x60] sm:$0xf]
    %v84 = vld [vmem:[%s1 + $0x64] sm:$0xf]
    %v85 = vld [vmem:[%s1 + $0x68] sm:$0xf]
    %v86 = vld [vmem:[%s1 + $0x6c] sm:$0xf]
    %v87 = vld [vmem:[%s1 + $0x70] sm:$0xf]
    %v88 = vld [vmem:[%s1 + $0x74] sm:$0xf]
    %v89 = vld [vmem:[%s1 + $0x78] sm:$0xf]
    %v90 = vld [vmem:[%s1 + $0x7c] sm:$0xf]
    %v107 = vunpack.c.l.b16 %v43
    %v108 = vunpack.c.h.b16 %v43
    %v109 = vunpack.c.l.b16 %v44
    %v110 = vunpack.c.h.b16 %v44
    %v111 = vunpack.c.l.b16 %v45
    %v112 = vunpack.c.h.b16 %v45
    %v113 = vunpack.c.l.b16 %v46
    %v114 = vunpack.c.h.b16 %v46
    %v115 = vunpack.c.l.b16 %v47
    %v116 = vunpack.c.h.b16 %v47
    %v117 = vunpack.c.l.b16 %v48
    %v118 = vunpack.c.h.b16 %v48
    %v119 = vunpack.c.l.b16 %v49
    %v120 = vunpack.c.h.b16 %v49
    %v121 = vunpack.c.l.b16 %v50
    %v122 = vunpack.c.h.b16 %v50
    %v123 = vunpack.c.l.b16 %v51
    %v124 = vunpack.c.h.b16 %v51
    %v125 = vunpack.c.l.b16 %v52
    %v126 = vunpack.c.h.b16 %v52
    %v127 = vunpack.c.l.b16 %v53
    %v128 = vunpack.c.h.b16 %v53
    %v129 = vunpack.c.l.b16 %v54
    %v130 = vunpack.c.h.b16 %v54
    %v131 = vunpack.c.l.b16 %v55
    %v132 = vunpack.c.h.b16 %v55
    %v133 = vunpack.c.l.b16 %v56
    %v134 = vunpack.c.h.b16 %v56
    %v135 = vunpack.c.l.b16 %v57
    %v136 = vunpack.c.h.b16 %v57
    %v137 = vunpack.c.l.b16 %v58
    %v138 = vunpack.c.h.b16 %v58
    %v139 = vpack.c.b16 %v109, %v107
    %v140 = vpack.c.b16 %v110, %v108
    %v141 = vpack.c.b16 %v113, %v111
    %v142 = vpack.c.b16 %v114, %v112
    %v143 = vpack.c.b16 %v117, %v115
    %v144 = vpack.c.b16 %v118, %v116
    %v145 = vpack.c.b16 %v121, %v119
    %v146 = vpack.c.b16 %v122, %v120
    %v147 = vpack.c.b16 %v125, %v123
    %v148 = vpack.c.b16 %v126, %v124
    %v149 = vpack.c.b16 %v129, %v127
    %v150 = vpack.c.b16 %v130, %v128
    %v151 = vpack.c.b16 %v133, %v131
    %v152 = vpack.c.b16 %v134, %v132
    %v153 = vpack.c.b16 %v137, %v135
    %v154 = vpack.c.b16 %v138, %v136
    %v203 = vunpack.c.l.b16 %v59
    %v204 = vunpack.c.l.b16 %v60
    %v205 = vunpack.c.l.b16 %v61
    %v206 = vunpack.c.l.b16 %v62
    %v207 = vunpack.c.l.b16 %v63
    %v208 = vunpack.c.l.b16 %v64
    %v209 = vunpack.c.l.b16 %v65
    %v210 = vunpack.c.l.b16 %v66
    %v211 = vunpack.c.l.b16 %v67
    %v212 = vunpack.c.l.b16 %v68
    %v213 = vunpack.c.l.b16 %v69
    %v214 = vunpack.c.l.b16 %v70
    %v215 = vunpack.c.l.b16 %v71
    %v216 = vunpack.c.l.b16 %v72
    %v217 = vunpack.c.l.b16 %v73
    %v218 = vunpack.c.l.b16 %v74
    %v219 = vunpack.c.l.b16 %v75
    %v220 = vunpack.c.l.b16 %v76
    %v221 = vunpack.c.l.b16 %v77
    %v222 = vunpack.c.l.b16 %v78
    %v223 = vunpack.c.l.b16 %v79
    %v224 = vunpack.c.l.b16 %v80
    %v225 = vunpack.c.l.b16 %v81
    %v226 = vunpack.c.l.b16 %v82
    %v227 = vunpack.c.l.b16 %v83
    %v228 = vunpack.c.l.b16 %v84
    %v229 = vunpack.c.l.b16 %v85
    %v230 = vunpack.c.l.b16 %v86
    %v231 = vunpack.c.l.b16 %v87
    %v232 = vunpack.c.l.b16 %v88
    %v233 = vunpack.c.l.b16 %v89
    %v234 = vunpack.c.l.b16 %v90
    %v235 = vpack.c.b16 %v204, %v203
    %v236 = vpack.c.b16 %v206, %v205
    %v237 = vpack.c.b16 %v208, %v207
    %v238 = vpack.c.b16 %v210, %v209
    %v239 = vpack.c.b16 %v212, %v211
    %v240 = vpack.c.b16 %v214, %v213
    %v241 = vpack.c.b16 %v216, %v215
    %v242 = vpack.c.b16 %v218, %v217
    %v243 = vpack.c.b16 %v220, %v219
    %v244 = vpack.c.b16 %v222, %v221
    %v245 = vpack.c.b16 %v224, %v223
    %v246 = vpack.c.b16 %v226, %v225
    %v247 = vpack.c.b16 %v228, %v227
    %v248 = vpack.c.b16 %v230, %v229
    %v249 = vpack.c.b16 %v232, %v231
    %v250 = vpack.c.b16 %v234, %v233
    %267 = vmatprep.subr.bf16.mxu0 0
    %268 = vmatpush1.bf16.msra.mxu0 %v235
    %269 = vmatprep.subr.bf16.mxu0 0
    %270 = vmatpush1.bf16.msra.mxu0 %v236
    %271 = vmatprep.subr.bf16.mxu0 0
    %272 = vmatpush1.bf16.msra.mxu0 %v237
    %273 = vmatprep.subr.bf16.mxu0 0
    %274 = vmatpush1.bf16.msra.mxu0 %v238
    %275 = vmatprep.subr.bf16.mxu0 0
    %276 = vmatpush1.bf16.msra.mxu0 %v239
    %277 = vmatprep.subr.bf16.mxu0 0
    %278 = vmatpush1.bf16.msra.mxu0 %v240
    %279 = vmatprep.subr.bf16.mxu0 0
    %280 = vmatpush1.bf16.msra.mxu0 %v241
    %281 = vmatprep.subr.bf16.mxu0 0
    %282 = vmatpush1.bf16.msra.mxu0 %v242
    %283 = vmatprep.subr.bf16.mxu0 0
    %284 = vmatpush1.bf16.msra.mxu0 %v243
    %285 = vmatprep.subr.bf16.mxu0 0
    %286 = vmatpush1.bf16.msra.mxu0 %v244
    %287 = vmatprep.subr.bf16.mxu0 0
    %288 = vmatpush1.bf16.msra.mxu0 %v245
    %289 = vmatprep.subr.bf16.mxu0 0
    %290 = vmatpush1.bf16.msra.mxu0 %v246
    %291 = vmatprep.subr.bf16.mxu0 0
    %292 = vmatpush1.bf16.msra.mxu0 %v247
    %293 = vmatprep.subr.bf16.mxu0 0
    %294 = vmatpush1.bf16.msra.mxu0 %v248
    %295 = vmatprep.subr.bf16.mxu0 0
    %296 = vmatpush1.bf16.msra.mxu0 %v249
    %297 = vmatprep.subr.bf16.mxu0 0
    %298 = vmatpush1.bf16.msra.mxu0 %v250
    %299 = vmatprep.mubr.bf16.mxu0 %v140
    %300 = vmatmul.mubr.bf16.gmra.mrb[0].mxu0 %v139
    %v301 = vpop.f32.mrb[0].mxu0
    %v302 = vadd.f32 0.0, %v301
    %v303 = vpop.f32.mrb[0].mxu0
    %v304 = vpop.f32.mrb[0].mxu0
    %v305 = vadd.f32 0.0, %v304
    %v306 = vpop.f32.mrb[0].mxu0
    %307 = vmatprep.mubr.bf16.mxu0 %v142
    %308 = vmatmul.mubr.bf16.gmra.mrb[0].mxu0 %v141
    %v309 = vpop.f32.mrb[0].mxu0
    %v310 = vadd.f32 0.0, %v309
    %v311 = vpop.f32.mrb[0].mxu0
    %v312 = vpop.f32.mrb[0].mxu0
    %v313 = vadd.f32 0.0, %v312
    %v314 = vpop.f32.mrb[0].mxu0
    %315 = vmatprep.mubr.bf16.mxu0 %v144
    %316 = vmatmul.mubr.bf16.gmra.mrb[0].mxu0 %v143
    %v317 = vpop.f32.mrb[0].mxu0
    %v318 = vadd.f32 0.0, %v317
    %v319 = vpop.f32.mrb[0].mxu0
    %v320 = vpop.f32.mrb[0].mxu0
    %v321 = vadd.f32 0.0, %v320
    %v322 = vpop.f32.mrb[0].mxu0
    %323 = vmatprep.mubr.bf16.mxu0 %v146
    %324 = vmatmul.mubr.bf16.gmra.mrb[0].mxu0 %v145
    %v325 = vpop.f32.mrb[0].mxu0
    %v326 = vadd.f32 0.0, %v325
    %v327 = vpop.f32.mrb[0].mxu0
    %v328 = vpop.f32.mrb[0].mxu0
    %v329 = vadd.f32 0.0, %v328
    %v330 = vpop.f32.mrb[0].mxu0
    %331 = vmatprep.mubr.bf16.mxu0 %v148
    %332 = vmatmul.mubr.bf16.gmra.mrb[0].mxu0 %v147
    %v333 = vpop.f32.mrb[0].mxu0
    %v334 = vadd.f32 0.0, %v333
    %v335 = vpop.f32.mrb[0].mxu0
    %v336 = vpop.f32.mrb[0].mxu0
    %v337 = vadd.f32 0.0, %v336
    %v338 = vpop.f32.mrb[0].mxu0
    %339 = vmatprep.mubr.bf16.mxu0 %v150
    %340 = vmatmul.mubr.bf16.gmra.mrb[0].mxu0 %v149
    %v341 = vpop.f32.mrb[0].mxu0
    %v342 = vadd.f32 0.0, %v341
    %v343 = vpop.f32.mrb[0].mxu0
    %v344 = vpop.f32.mrb[0].mxu0
    %v345 = vadd.f32 0.0, %v344
    %v346 = vpop.f32.mrb[0].mxu0
    %347 = vmatprep.mubr.bf16.mxu0 %v152
    %348 = vmatmul.mubr.bf16.gmra.mrb[0].mxu0 %v151
    %v349 = vpop.f32.mrb[0].mxu0
    %v350 = vadd.f32 0.0, %v349
    %v351 = vpop.f32.mrb[0].mxu0
    %v352 = vpop.f32.mrb[0].mxu0
    %v353 = vadd.f32 0.0, %v352
    %v354 = vpop.f32.mrb[0].mxu0
    %355 = vmatprep.mubr.bf16.mxu0 %v154
    %356 = vmatmul.mubr.bf16.gmra.mrb[0].mxu0 %v153
    %v357 = vpop.f32.mrb[0].mxu0
    %v358 = vadd.f32 0.0, %v357
    %v359 = vpop.f32.mrb[0].mxu0
    %v360 = vpop.f32.mrb[0].mxu0
    %v361 = vadd.f32 0.0, %v360
    %v362 = vpop.f32.mrb[0].mxu0
    %363 = vdwg.mxu0
    %v364 = vld [vmem:[%s2] sm:$0xff]
    %v365 = vld [vmem:[%s2 + $0x8] sm:$0xff]
    %v366 = vld [vmem:[%s2 + $0x10] sm:$0xff]
    %v367 = vld [vmem:[%s2 + $0x18] sm:$0xff]
    %v368 = vld [vmem:[%s3] sm:$0xff]
    %v369 = vld [vmem:[%s3 + $0x8] sm:$0x1]
    %v370 = vld [vmem:[%s4] sm:$0x1]
    %vm371 = vcmask 130048
    %v372 = vsel %vm371, %v302, 0.0
    %373 = vadd.xlane.f32.xlu0 %v372
    %v374 = vpop.xlane.xlu0 %373
    %v375 = vsel %vm371, %v305, 0.0
    %376 = vadd.xlane.f32.xlu0 %v375
    %v377 = vpop.xlane.xlu0 %376
    %v378 = vsel %vm371, %v310, 0.0
    %379 = vadd.xlane.f32.xlu0 %v378
    %v380 = vpop.xlane.xlu0 %379
    %v381 = vsel %vm371, %v313, 0.0
    %382 = vadd.xlane.f32.xlu0 %v381
    %v383 = vpop.xlane.xlu0 %382
    %v384 = vsel %vm371, %v318, 0.0
    %385 = vadd.xlane.f32.xlu0 %v384
    %v386 = vpop.xlane.xlu0 %385
    %v387 = vsel %vm371, %v321, 0.0
    %388 = vadd.xlane.f32.xlu0 %v387
    %v389 = vpop.xlane.xlu0 %388
    %v390 = vsel %vm371, %v326, 0.0
    %391 = vadd.xlane.f32.xlu0 %v390
    %v392 = vpop.xlane.xlu0 %391
    %v393 = vsel %vm371, %v329, 0.0
    %394 = vadd.xlane.f32.xlu0 %v393
    %v395 = vpop.xlane.xlu0 %394
    %v396 = vsel %vm371, %v334, 0.0
    %397 = vadd.xlane.f32.xlu0 %v396
    %v398 = vpop.xlane.xlu0 %397
    %v399 = vsel %vm371, %v337, 0.0
    %400 = vadd.xlane.f32.xlu0 %v399
    %v401 = vpop.xlane.xlu0 %400
    %v402 = vsel %vm371, %v342, 0.0
    %403 = vadd.xlane.f32.xlu0 %v402
    %v404 = vpop.xlane.xlu0 %403
    %v405 = vsel %vm371, %v345, 0.0
    %406 = vadd.xlane.f32.xlu0 %v405
    %v407 = vpop.xlane.xlu0 %406
    %v408 = vsel %vm371, %v350, 0.0
    %409 = vadd.xlane.f32.xlu0 %v408
    %v410 = vpop.xlane.xlu0 %409
    %v411 = vsel %vm371, %v353, 0.0
    %412 = vadd.xlane.f32.xlu0 %v411
    %v413 = vpop.xlane.xlu0 %412
    %v414 = vsel %vm371, %v358, 0.0
    %415 = vadd.xlane.f32.xlu0 %v414
    %v416 = vpop.xlane.xlu0 %415
    %v417 = vsel %vm371, %v361, 0.0
    %418 = vadd.xlane.f32.xlu0 %v417
    %v419 = vpop.xlane.xlu0 %418
    %v420 = vrcp.pop 16.0
    %v421 = vmul.f32 %v374, %v420
    %v422 = vmul.f32 %v377, %v420
    %v423 = vmul.f32 %v380, %v420
    %v424 = vmul.f32 %v383, %v420
    %v425 = vmul.f32 %v386, %v420
    %v426 = vmul.f32 %v389, %v420
    %v427 = vmul.f32 %v392, %v420
    %v428 = vmul.f32 %v395, %v420
    %v429 = vmul.f32 %v398, %v420
    %v430 = vmul.f32 %v401, %v420
    %v431 = vmul.f32 %v404, %v420
    %v432 = vmul.f32 %v407, %v420
    %v433 = vmul.f32 %v410, %v420
    %v434 = vmul.f32 %v413, %v420
    %v435 = vmul.f32 %v416, %v420
    %v436 = vmul.f32 %v419, %v420
    %v453 = vlaneseq
    %v454 = vand.u32 %v453, 127
    %v455 = vlaneseq
    %v456 = vshrl.u32 %v455, 7
    %v457 = vsub.s32 %v454, %v456
    %v458 = vrot.slane %v421, %v457
    %v459 = vadd.s32 %v454, 4294967288
    %v460 = vlaneseq
    %v461 = vshrl.u32 %v460, 7
    %v462 = vsub.s32 %v459, %v461
    %v463 = vrot.slane %v422, %v462
    %vm464 = vcmask 130112
    %v465 = vsel %vm464, %v463, %v458
    %v466 = vadd.s32 %v454, 4294967280
    %v467 = vlaneseq
    %v468 = vshrl.u32 %v467, 7
    %v469 = vsub.s32 %v466, %v468
    %v470 = vrot.slane %v423, %v469
    %vm471 = vcmask 195712
    %v472 = vsel %vm471, %v470, %v465
    %v473 = vadd.s32 %v454, 4294967272
    %v474 = vlaneseq
    %v475 = vshrl.u32 %v474, 7
    %v476 = vsub.s32 %v473, %v475
    %v477 = vrot.slane %v424, %v476
    %vm478 = vcmask 261312
    %v479 = vsel %vm478, %v477, %v472
    %v480 = vlaneseq
    %v481 = vshrl.u32 %v480, 7
    %v482 = vsub.s32 %v454, %v481
    %v483 = vrot.slane %v425, %v482
    %v484 = vlaneseq
    %v485 = vshrl.u32 %v484, 7
    %v486 = vsub.s32 %v459, %v485
    %v487 = vrot.slane %v426, %v486
    %v488 = vsel %vm464, %v487, %v483
    %v489 = vlaneseq
    %v490 = vshrl.u32 %v489, 7
    %v491 = vsub.s32 %v466, %v490
    %v492 = vrot.slane %v427, %v491
    %v493 = vsel %vm471, %v492, %v488
    %v494 = vlaneseq
    %v495 = vshrl.u32 %v494, 7
    %v496 = vsub.s32 %v473, %v495
    %v497 = vrot.slane %v428, %v496
    %v498 = vsel %vm478, %v497, %v493
    %v499 = vlaneseq
    %v500 = vshrl.u32 %v499, 7
    %v501 = vsub.s32 %v454, %v500
    %v502 = vrot.slane %v429, %v501
    %v503 = vlaneseq
    %v504 = vshrl.u32 %v503, 7
    %v505 = vsub.s32 %v459, %v504
    %v506 = vrot.slane %v430, %v505
    %v507 = vsel %vm464, %v506, %v502
    %v508 = vlaneseq
    %v509 = vshrl.u32 %v508, 7
    %v510 = vsub.s32 %v466, %v509
    %v511 = vrot.slane %v431, %v510
    %v512 = vsel %vm471, %v511, %v507
    %v513 = vlaneseq
    %v514 = vshrl.u32 %v513, 7
    %v515 = vsub.s32 %v473, %v514
    %v516 = vrot.slane %v432, %v515
    %v517 = vsel %vm478, %v516, %v512
    %v518 = vlaneseq
    %v519 = vshrl.u32 %v518, 7
    %v520 = vsub.s32 %v454, %v519
    %v521 = vrot.slane %v433, %v520
    %v522 = vlaneseq
    %v523 = vshrl.u32 %v522, 7
    %v524 = vsub.s32 %v459, %v523
    %v525 = vrot.slane %v434, %v524
    %v526 = vsel %vm464, %v525, %v521
    %v527 = vlaneseq
    %v528 = vshrl.u32 %v527, 7
    %v529 = vsub.s32 %v466, %v528
    %v530 = vrot.slane %v435, %v529
    %v531 = vsel %vm471, %v530, %v526
    %v532 = vlaneseq
    %v533 = vshrl.u32 %v532, 7
    %v534 = vsub.s32 %v473, %v533
    %v535 = vrot.slane %v436, %v534
    %v536 = vsel %vm478, %v535, %v531
    %vm537 = vcmask 1041409
    %v538 = vsel %vm537, %v498, %v479
    %vm539 = vcmask 1042434
    %v540 = vsel %vm539, %v517, %v538
    %vm541 = vcmask 1043459
    %v542 = vsel %vm541, %v536, %v540
    %vm543 = vcmask 261120
    %v544 = vsel %vm543, %v542, 0
    %546 = vmatprep.subr.mxu0 0.0
    %547 = vmatpush1.msra.mxu0 %v364
    %548 = vmatprep.subr.mxu0 0.0
    %549 = vmatpush1.msra.mxu0 %v365
    %550 = vmatprep.subr.mxu0 0.0
    %551 = vmatpush1.msra.mxu0 %v366
    %552 = vmatprep.subr.mxu0 0.0
    %553 = vmatpush1.msra.mxu0 %v367
    %554 = vmatprep.subr.mxu0 0.0
    %555 = vmatpush1.msra.mxu0 0.0
    %556 = vmatprep.subr.mxu0 0.0
    %557 = vmatpush1.msra.mxu0 0.0
    %558 = vmatprep.subr.mxu0 0.0
    %559 = vmatpush1.msra.mxu0 0.0
    %560 = vmatprep.subr.mxu0 0.0
    %561 = vmatpush1.msra.mxu0 0.0
    %562 = vmatprep.subr.mxu0 0.0
    %563 = vmatpush1.msra.mxu0 0.0
    %564 = vmatprep.subr.mxu0 0.0
    %565 = vmatpush1.msra.mxu0 0.0
    %566 = vmatprep.subr.mxu0 0.0
    %567 = vmatpush1.msra.mxu0 0.0
    %568 = vmatprep.subr.mxu0 0.0
    %569 = vmatpush1.msra.mxu0 0.0
    %570 = vmatprep.subr.mxu0 0.0
    %571 = vmatpush1.msra.mxu0 0.0
    %572 = vmatprep.subr.mxu0 0.0
    %573 = vmatpush1.msra.mxu0 0.0
    %574 = vmatprep.subr.mxu0 0.0
    %575 = vmatpush1.msra.mxu0 0.0
    %576 = vmatprep.subr.mxu0 0.0
    %577 = vmatpush1.msra.mxu0 0.0
    %578 = vmatprep.subr.mxu0 0.0
    %579 = vmatpush1.msra.mxu0 0.0
    %580 = vmatprep.subr.mxu0 0.0
    %581 = vmatpush1.msra.mxu0 0.0
    %582 = vmatprep.subr.mxu0 0.0
    %583 = vmatpush1.msra.mxu0 0.0
    %584 = vmatprep.subr.mxu0 0.0
    %585 = vmatpush1.msra.mxu0 0.0
    %586 = vmatprep.subr.mxu0 0.0
    %587 = vmatpush1.msra.mxu0 0.0
    %588 = vmatprep.subr.mxu0 0.0
    %589 = vmatpush1.msra.mxu0 0.0
    %590 = vmatprep.subr.mxu0 0.0
    %591 = vmatpush1.msra.mxu0 0.0
    %592 = vmatprep.subr.mxu0 0.0
    %593 = vmatpush1.msra.mxu0 0.0
    %594 = vmatprep.subr.mxu0 0.0
    %595 = vmatpush1.msra.mxu0 0.0
    %596 = vmatprep.subr.mxu0 0.0
    %597 = vmatpush1.msra.mxu0 0.0
    %598 = vmatprep.subr.mxu0 0.0
    %599 = vmatpush1.msra.mxu0 0.0
    %600 = vmatprep.subr.mxu0 0.0
    %601 = vmatpush1.msra.mxu0 0.0
    %602 = vmatprep.subr.mxu0 0.0
    %603 = vmatpush1.msra.mxu0 0.0
    %604 = vmatprep.subr.mxu0 0.0
    %605 = vmatpush1.msra.mxu0 0.0
    %606 = vmatprep.subr.mxu0 0.0
    %607 = vmatpush1.msra.mxu0 0.0
    %608 = vmatprep.subr.mxu0 0.0
    %609 = vmatpush1.msra.mxu0 0.0
    %610 = vmatprep.mubr.f32.mxu0 0.0
    %611 = vmatmul.mubr.f32.gmra.mrb[0].mxu0 %v544
    %v612 = vpop.f32.mrb[0].mxu0
    %v613 = vadd.f32 0.0, %v612
    %v614 = vpop.f32.mrb[0].mxu0
    %615 = vdwg.mxu0
    %v616 = vmax.f32 %v613, 0.0
    %v618 = vlaneseq
    %v619 = vshrl.u32 %v618, 7
    %v620 = vsub.s32 0, %v619
    %v621 = vrot.slane %v370, %v620
    %vm623 = vcmask 72704
    %v625 = vsel %vm623, %v616, 0
    %vm627 = vcmask 1040384
    %v629 = vsel %vm627, %v369, 0
    %631 = vmatprep.subr.mxu0 0.0
    %632 = vmatpush1.msra.mxu0 %v368
    %633 = vmatprep.subr.mxu0 0.0
    %634 = vmatpush1.msra.mxu0 %v629
    %635 = vmatprep.subr.mxu0 0.0
    %636 = vmatpush1.msra.mxu0 0.0
    %637 = vmatprep.subr.mxu0 0.0
    %638 = vmatpush1.msra.mxu0 0.0
    %639 = vmatprep.subr.mxu0 0.0
    %640 = vmatpush1.msra.mxu0 0.0
    %641 = vmatprep.subr.mxu0 0.0
    %642 = vmatpush1.msra.mxu0 0.0
    %643 = vmatprep.subr.mxu0 0.0
    %644 = vmatpush1.msra.mxu0 0.0
    %645 = vmatprep.subr.mxu0 0.0
    %646 = vmatpush1.msra.mxu0 0.0
    %647 = vmatprep.subr.mxu0 0.0
    %648 = vmatpush1.msra.mxu0 0.0
    %649 = vmatprep.subr.mxu0 0.0
    %650 = vmatpush1.msra.mxu0 0.0
    %651 = vmatprep.subr.mxu0 0.0
    %652 = vmatpush1.msra.mxu0 0.0
    %653 = vmatprep.subr.mxu0 0.0
    %654 = vmatpush1.msra.mxu0 0.0
    %655 = vmatprep.subr.mxu0 0.0
    %656 = vmatpush1.msra.mxu0 0.0
    %657 = vmatprep.subr.mxu0 0.0
    %658 = vmatpush1.msra.mxu0 0.0
    %659 = vmatprep.subr.mxu0 0.0
    %660 = vmatpush1.msra.mxu0 0.0
    %661 = vmatprep.subr.mxu0 0.0
    %662 = vmatpush1.msra.mxu0 0.0
    %663 = vmatprep.subr.mxu0 0.0
    %664 = vmatpush1.msra.mxu0 0.0
    %665 = vmatprep.subr.mxu0 0.0
    %666 = vmatpush1.msra.mxu0 0.0
    %667 = vmatprep.subr.mxu0 0.0
    %668 = vmatpush1.msra.mxu0 0.0
    %669 = vmatprep.subr.mxu0 0.0
    %670 = vmatpush1.msra.mxu0 0.0
    %671 = vmatprep.subr.mxu0 0.0
    %672 = vmatpush1.msra.mxu0 0.0
    %673 = vmatprep.subr.mxu0 0.0
    %674 = vmatpush1.msra.mxu0 0.0
    %675 = vmatprep.subr.mxu0 0.0
    %676 = vmatpush1.msra.mxu0 0.0
    %677 = vmatprep.subr.mxu0 0.0
    %678 = vmatpush1.msra.mxu0 0.0
    %679 = vmatprep.subr.mxu0 0.0
    %680 = vmatpush1.msra.mxu0 0.0
    %681 = vmatprep.subr.mxu0 0.0
    %682 = vmatpush1.msra.mxu0 0.0
    %683 = vmatprep.subr.mxu0 0.0
    %684 = vmatpush1.msra.mxu0 0.0
    %685 = vmatprep.subr.mxu0 0.0
    %686 = vmatpush1.msra.mxu0 0.0
    %687 = vmatprep.subr.mxu0 0.0
    %688 = vmatpush1.msra.mxu0 0.0
    %689 = vmatprep.subr.mxu0 0.0
    %690 = vmatpush1.msra.mxu0 0.0
    %691 = vmatprep.subr.mxu0 0.0
    %692 = vmatpush1.msra.mxu0 0.0
    %693 = vmatprep.subr.mxu0 0.0
    %694 = vmatpush1.msra.mxu0 0.0
    %695 = vmatprep.mubr.f32.mxu0 0.0
    %696 = vmatmul.mubr.f32.gmra.mrb[0].mxu0 %v625
    %v697 = vpop.f32.mrb[0].mxu0
    %v698 = vadd.f32 %v621, %v697
    %v699 = vpop.f32.mrb[0].mxu0
    %700 = vdwg.mxu0
    %v701 = vmul.f32 %v698, 0.029411765
    %vm702 = vcmask 27648
    %v703 = vsel %vm702, %v701, -inf
    %704 = vmax.xlane.f32.xlu0 %v703
    %v705 = vpop.xlane.xlu0 %704
    %v706 = vsub.f32 %v701, %v705
    %v707 = vmul.f32 %v706, 1.442695
    %v708 = vpow.pop %v707
    %v709 = vsel %vm702, %v708, 0.0
    %710 = vadd.xlane.f32.xlu0 %v709
    %v711 = vpop.xlane.xlu0 %710
    %v712 = vrcp.pop %v711
    %v713 = vmul.f32 %v708, %v712
    %v714 = vld [vmem:[%s5] sm:$0xf]
    %v715 = vld [vmem:[%s6] sm:$0xf]
    %vm716 = vcmask 31744
    %v718 = vsel %vm716, %v713, 0
    %vm720 = vcmask 1043456
    %v722 = vsel %vm720, %v714, 0
    %724 = vmatprep.subr.mxu0 0.0
    %725 = vmatpush1.msra.mxu0 %v722
    %726 = vmatprep.subr.mxu0 0.0
    %727 = vmatpush1.msra.mxu0 0.0
    %728 = vmatprep.subr.mxu0 0.0
    %729 = vmatpush1.msra.mxu0 0.0
    %730 = vmatprep.subr.mxu0 0.0
    %731 = vmatpush1.msra.mxu0 0.0
    %732 = vmatprep.subr.mxu0 0.0
    %733 = vmatpush1.msra.mxu0 0.0
    %734 = vmatprep.subr.mxu0 0.0
    %735 = vmatpush1.msra.mxu0 0.0
    %736 = vmatprep.subr.mxu0 0.0
    %737 = vmatpush1.msra.mxu0 0.0
    %738 = vmatprep.subr.mxu0 0.0
    %739 = vmatpush1.msra.mxu0 0.0
    %740 = vmatprep.subr.mxu0 0.0
    %741 = vmatpush1.msra.mxu0 0.0
    %742 = vmatprep.subr.mxu0 0.0
    %743 = vmatpush1.msra.mxu0 0.0
    %744 = vmatprep.subr.mxu0 0.0
    %745 = vmatpush1.msra.mxu0 0.0
    %746 = vmatprep.subr.mxu0 0.0
    %747 = vmatpush1.msra.mxu0 0.0
    %748 = vmatprep.subr.mxu0 0.0
    %749 = vmatpush1.msra.mxu0 0.0
    %750 = vmatprep.subr.mxu0 0.0
    %751 = vmatpush1.msra.mxu0 0.0
    %752 = vmatprep.subr.mxu0 0.0
    %753 = vmatpush1.msra.mxu0 0.0
    %754 = vmatprep.subr.mxu0 0.0
    %755 = vmatpush1.msra.mxu0 0.0
    %756 = vmatprep.subr.mxu0 0.0
    %757 = vmatpush1.msra.mxu0 0.0
    %758 = vmatprep.subr.mxu0 0.0
    %759 = vmatpush1.msra.mxu0 0.0
    %760 = vmatprep.subr.mxu0 0.0
    %761 = vmatpush1.msra.mxu0 0.0
    %762 = vmatprep.subr.mxu0 0.0
    %763 = vmatpush1.msra.mxu0 0.0
    %764 = vmatprep.subr.mxu0 0.0
    %765 = vmatpush1.msra.mxu0 0.0
    %766 = vmatprep.subr.mxu0 0.0
    %767 = vmatpush1.msra.mxu0 0.0
    %768 = vmatprep.subr.mxu0 0.0
    %769 = vmatpush1.msra.mxu0 0.0
    %770 = vmatprep.subr.mxu0 0.0
    %771 = vmatpush1.msra.mxu0 0.0
    %772 = vmatprep.subr.mxu0 0.0
    %773 = vmatpush1.msra.mxu0 0.0
    %774 = vmatprep.subr.mxu0 0.0
    %775 = vmatpush1.msra.mxu0 0.0
    %776 = vmatprep.subr.mxu0 0.0
    %777 = vmatpush1.msra.mxu0 0.0
    %778 = vmatprep.subr.mxu0 0.0
    %779 = vmatpush1.msra.mxu0 0.0
    %780 = vmatprep.subr.mxu0 0.0
    %781 = vmatpush1.msra.mxu0 0.0
    %782 = vmatprep.subr.mxu0 0.0
    %783 = vmatpush1.msra.mxu0 0.0
    %784 = vmatprep.subr.mxu0 0.0
    %785 = vmatpush1.msra.mxu0 0.0
    %786 = vmatprep.subr.mxu0 0.0
    %787 = vmatpush1.msra.mxu0 0.0
    %788 = vmatprep.mubr.f32.mxu0 0.0
    %789 = vmatmul.mubr.f32.gmra.mrb[0].mxu0 %v718
    %v790 = vpop.f32.mrb[0].mxu0
    %v791 = vadd.f32 0.0, %v790
    %v792 = vpop.f32.mrb[0].mxu0
    %793 = vdwg.mxu0
    %795 = vrot.lane.b32.xlu0 %v791, 96
    %v796 = vpop.permute.xlu0 %795
    %v798 = vunpack.c.l.s4 1983009808
    %v799 = vunpack.c.0.s8 %v798
    %v800 = vlaneseq
    %v801 = vshrl.u32 %v800, 7
    %v802 = vsub.s32 %v799, %v801
    %v803 = vrot.slane %v791, %v802
    %v806 = vunpack.c.l.s4 1983009808
    %v807 = vunpack.c.0.s8 %v806
    %v808 = vlaneseq
    %v809 = vshrl.u32 %v808, 7
    %v810 = vsub.s32 %v807, %v809
    %v811 = vrot.slane %v796, %v810
    %v812 = vcombine.low %v803, %v811
    %v813 = vcombine.high %v803, %v811
    %v815 = vunpack.c.l.s4 1934713408
    %v816 = vunpack.c.0.s8 %v815
    %v817 = vlaneseq
    %v818 = vshrl.u32 %v817, 7
    %v819 = vsub.s32 %v816, %v818
    %v820 = vrot.slane %v812, %v819
    %v822 = vunpack.c.l.s4 1934713408
    %v823 = vunpack.c.0.s8 %v822
    %v824 = vlaneseq
    %v825 = vshrl.u32 %v824, 7
    %v826 = vsub.s32 %v823, %v825
    %v827 = vrot.slane %v813, %v826
    %v828 = vcombine.high %v820, 0.0
    %v829 = vcombine.high %v827, 0.0
    %v831 = vsel %vm720, %v715, 0
    %833 = vmatprep.subr.mxu0 0.0
    %834 = vmatpush1.msra.mxu0 %v831
    %835 = vmatprep.subr.mxu0 0.0
    %836 = vmatpush1.msra.mxu0 0.0
    %837 = vmatprep.subr.mxu0 0.0
    %838 = vmatpush1.msra.mxu0 0.0
    %839 = vmatprep.subr.mxu0 0.0
    %840 = vmatpush1.msra.mxu0 0.0
    %841 = vmatprep.subr.mxu0 0.0
    %842 = vmatpush1.msra.mxu0 0.0
    %843 = vmatprep.subr.mxu0 0.0
    %844 = vmatpush1.msra.mxu0 0.0
    %845 = vmatprep.subr.mxu0 0.0
    %846 = vmatpush1.msra.mxu0 0.0
    %847 = vmatprep.subr.mxu0 0.0
    %848 = vmatpush1.msra.mxu0 0.0
    %849 = vmatprep.subr.mxu0 0.0
    %850 = vmatpush1.msra.mxu0 0.0
    %851 = vmatprep.subr.mxu0 0.0
    %852 = vmatpush1.msra.mxu0 0.0
    %853 = vmatprep.subr.mxu0 0.0
    %854 = vmatpush1.msra.mxu0 0.0
    %855 = vmatprep.subr.mxu0 0.0
    %856 = vmatpush1.msra.mxu0 0.0
    %857 = vmatprep.subr.mxu0 0.0
    %858 = vmatpush1.msra.mxu0 0.0
    %859 = vmatprep.subr.mxu0 0.0
    %860 = vmatpush1.msra.mxu0 0.0
    %861 = vmatprep.subr.mxu0 0.0
    %862 = vmatpush1.msra.mxu0 0.0
    %863 = vmatprep.subr.mxu0 0.0
    %864 = vmatpush1.msra.mxu0 0.0
    %865 = vmatprep.subr.mxu0 0.0
    %866 = vmatpush1.msra.mxu0 0.0
    %867 = vmatprep.subr.mxu0 0.0
    %868 = vmatpush1.msra.mxu0 0.0
    %869 = vmatprep.subr.mxu0 0.0
    %870 = vmatpush1.msra.mxu0 0.0
    %871 = vmatprep.subr.mxu0 0.0
    %872 = vmatpush1.msra.mxu0 0.0
    %873 = vmatprep.subr.mxu0 0.0
    %874 = vmatpush1.msra.mxu0 0.0
    %875 = vmatprep.subr.mxu0 0.0
    %876 = vmatpush1.msra.mxu0 0.0
    %877 = vmatprep.subr.mxu0 0.0
    %878 = vmatpush1.msra.mxu0 0.0
    %879 = vmatprep.subr.mxu0 0.0
    %880 = vmatpush1.msra.mxu0 0.0
    %881 = vmatprep.subr.mxu0 0.0
    %882 = vmatpush1.msra.mxu0 0.0
    %883 = vmatprep.subr.mxu0 0.0
    %884 = vmatpush1.msra.mxu0 0.0
    %885 = vmatprep.subr.mxu0 0.0
    %886 = vmatpush1.msra.mxu0 0.0
    %887 = vmatprep.subr.mxu0 0.0
    %888 = vmatpush1.msra.mxu0 0.0
    %889 = vmatprep.subr.mxu0 0.0
    %890 = vmatpush1.msra.mxu0 0.0
    %891 = vmatprep.subr.mxu0 0.0
    %892 = vmatpush1.msra.mxu0 0.0
    %893 = vmatprep.subr.mxu0 0.0
    %894 = vmatpush1.msra.mxu0 0.0
    %895 = vmatprep.subr.mxu0 0.0
    %896 = vmatpush1.msra.mxu0 0.0
    %897 = vmatprep.mubr.f32.mxu0 0.0
    %898 = vmatmul.mubr.f32.gmra.mrb[0].mxu0 %v718
    %v899 = vpop.f32.mrb[0].mxu0
    %v900 = vadd.f32 0.0, %v899
    %v901 = vpop.f32.mrb[0].mxu0
    %902 = vdwg.mxu0
    %v903 = vlaneseq
    %v904 = vshrl.u32 %v903, 7
    %v905 = vsub.s32 0, %v904
    %v906 = vrot.slane %v900, %v905
    %908 = vbcast.lane.b32.xlu0 %v906, 256
    %v909 = vpop.permute.xlu0 %908
    %v910 = vlaneseq
    %v911 = vshrl.u32 %v910, 7
    %v912 = vsub.s32 1, %v911
    %v913 = vrot.slane %v900, %v912
    %915 = vbcast.lane.b32.xlu0 %v913, 256
    %v916 = vpop.permute.xlu0 %915
    %v917 = vlaneseq
    %v918 = vshrl.u32 %v917, 7
    %v919 = vsub.s32 2, %v918
    %v920 = vrot.slane %v900, %v919
    %922 = vbcast.lane.b32.xlu0 %v920, 256
    %v923 = vpop.permute.xlu0 %922
    %v924 = vlaneseq
    %v925 = vshrl.u32 %v924, 7
    %v926 = vsub.s32 3, %v925
    %v927 = vrot.slane %v900, %v926
    %929 = vbcast.lane.b32.xlu0 %v927, 256
    %v930 = vpop.permute.xlu0 %929
    %v932 = vsel %vm543, %v820, 0
    %934 = vmatprep.subr.mxu0 0.0
    %935 = vmatpush1.msra.mxu0 %v302
    %936 = vmatprep.subr.mxu0 0.0
    %937 = vmatpush1.msra.mxu0 %v305
    %938 = vmatprep.subr.mxu0 0.0
    %939 = vmatpush1.msra.mxu0 %v310
    %940 = vmatprep.subr.mxu0 0.0
    %941 = vmatpush1.msra.mxu0 %v313
    %942 = vmatprep.subr.mxu0 0.0
    %943 = vmatpush1.msra.mxu0 0.0
    %944 = vmatprep.subr.mxu0 0.0
    %945 = vmatpush1.msra.mxu0 0.0
    %946 = vmatprep.subr.mxu0 0.0
    %947 = vmatpush1.msra.mxu0 0.0
    %948 = vmatprep.subr.mxu0 0.0
    %949 = vmatpush1.msra.mxu0 0.0
    %950 = vmatprep.subr.mxu0 0.0
    %951 = vmatpush1.msra.mxu0 0.0
    %952 = vmatprep.subr.mxu0 0.0
    %953 = vmatpush1.msra.mxu0 0.0
    %954 = vmatprep.subr.mxu0 0.0
    %955 = vmatpush1.msra.mxu0 0.0
    %956 = vmatprep.subr.mxu0 0.0
    %957 = vmatpush1.msra.mxu0 0.0
    %958 = vmatprep.subr.mxu0 0.0
    %959 = vmatpush1.msra.mxu0 0.0
    %960 = vmatprep.subr.mxu0 0.0
    %961 = vmatpush1.msra.mxu0 0.0
    %962 = vmatprep.subr.mxu0 0.0
    %963 = vmatpush1.msra.mxu0 0.0
    %964 = vmatprep.subr.mxu0 0.0
    %965 = vmatpush1.msra.mxu0 0.0
    %966 = vmatprep.subr.mxu0 0.0
    %967 = vmatpush1.msra.mxu0 0.0
    %968 = vmatprep.subr.mxu0 0.0
    %969 = vmatpush1.msra.mxu0 0.0
    %970 = vmatprep.subr.mxu0 0.0
    %971 = vmatpush1.msra.mxu0 0.0
    %972 = vmatprep.subr.mxu0 0.0
    %973 = vmatpush1.msra.mxu0 0.0
    %974 = vmatprep.subr.mxu0 0.0
    %975 = vmatpush1.msra.mxu0 0.0
    %976 = vmatprep.subr.mxu0 0.0
    %977 = vmatpush1.msra.mxu0 0.0
    %978 = vmatprep.subr.mxu0 0.0
    %979 = vmatpush1.msra.mxu0 0.0
    %980 = vmatprep.subr.mxu0 0.0
    %981 = vmatpush1.msra.mxu0 0.0
    %982 = vmatprep.subr.mxu0 0.0
    %983 = vmatpush1.msra.mxu0 0.0
    %984 = vmatprep.subr.mxu0 0.0
    %985 = vmatpush1.msra.mxu0 0.0
    %986 = vmatprep.subr.mxu0 0.0
    %987 = vmatpush1.msra.mxu0 0.0
    %988 = vmatprep.subr.mxu0 0.0
    %989 = vmatpush1.msra.mxu0 0.0
    %990 = vmatprep.subr.mxu0 0.0
    %991 = vmatpush1.msra.mxu0 0.0
    %992 = vmatprep.subr.mxu0 0.0
    %993 = vmatpush1.msra.mxu0 0.0
    %994 = vmatprep.subr.mxu0 0.0
    %995 = vmatpush1.msra.mxu0 0.0
    %996 = vmatprep.subr.mxu0 0.0
    %997 = vmatpush1.msra.mxu0 0.0
    %998 = vmatprep.mubr.f32.mxu0 0.0
    %999 = vmatmul.mubr.f32.gmra.mrb[0].mxu0 %v932
    %v1000 = vpop.f32.mrb[0].mxu0
    %v1001 = vadd.f32 %v909, %v1000
    %v1002 = vpop.f32.mrb[0].mxu0
    %1003 = vdwg.mxu0
    %v1005 = vsel %vm543, %v828, 0
    %1007 = vmatprep.subr.mxu0 0.0
    %1008 = vmatpush1.msra.mxu0 %v318
    %1009 = vmatprep.subr.mxu0 0.0
    %1010 = vmatpush1.msra.mxu0 %v321
    %1011 = vmatprep.subr.mxu0 0.0
    %1012 = vmatpush1.msra.mxu0 %v326
    %1013 = vmatprep.subr.mxu0 0.0
    %1014 = vmatpush1.msra.mxu0 %v329
    %1015 = vmatprep.subr.mxu0 0.0
    %1016 = vmatpush1.msra.mxu0 0.0
    %1017 = vmatprep.subr.mxu0 0.0
    %1018 = vmatpush1.msra.mxu0 0.0
    %1019 = vmatprep.subr.mxu0 0.0
    %1020 = vmatpush1.msra.mxu0 0.0
    %1021 = vmatprep.subr.mxu0 0.0
    %1022 = vmatpush1.msra.mxu0 0.0
    %1023 = vmatprep.subr.mxu0 0.0
    %1024 = vmatpush1.msra.mxu0 0.0
    %1025 = vmatprep.subr.mxu0 0.0
    %1026 = vmatpush1.msra.mxu0 0.0
    %1027 = vmatprep.subr.mxu0 0.0
    %1028 = vmatpush1.msra.mxu0 0.0
    %1029 = vmatprep.subr.mxu0 0.0
    %1030 = vmatpush1.msra.mxu0 0.0
    %1031 = vmatprep.subr.mxu0 0.0
    %1032 = vmatpush1.msra.mxu0 0.0
    %1033 = vmatprep.subr.mxu0 0.0
    %1034 = vmatpush1.msra.mxu0 0.0
    %1035 = vmatprep.subr.mxu0 0.0
    %1036 = vmatpush1.msra.mxu0 0.0
    %1037 = vmatprep.subr.mxu0 0.0
    %1038 = vmatpush1.msra.mxu0 0.0
    %1039 = vmatprep.subr.mxu0 0.0
    %1040 = vmatpush1.msra.mxu0 0.0
    %1041 = vmatprep.subr.mxu0 0.0
    %1042 = vmatpush1.msra.mxu0 0.0
    %1043 = vmatprep.subr.mxu0 0.0
    %1044 = vmatpush1.msra.mxu0 0.0
    %1045 = vmatprep.subr.mxu0 0.0
    %1046 = vmatpush1.msra.mxu0 0.0
    %1047 = vmatprep.subr.mxu0 0.0
    %1048 = vmatpush1.msra.mxu0 0.0
    %1049 = vmatprep.subr.mxu0 0.0
    %1050 = vmatpush1.msra.mxu0 0.0
    %1051 = vmatprep.subr.mxu0 0.0
    %1052 = vmatpush1.msra.mxu0 0.0
    %1053 = vmatprep.subr.mxu0 0.0
    %1054 = vmatpush1.msra.mxu0 0.0
    %1055 = vmatprep.subr.mxu0 0.0
    %1056 = vmatpush1.msra.mxu0 0.0
    %1057 = vmatprep.subr.mxu0 0.0
    %1058 = vmatpush1.msra.mxu0 0.0
    %1059 = vmatprep.subr.mxu0 0.0
    %1060 = vmatpush1.msra.mxu0 0.0
    %1061 = vmatprep.subr.mxu0 0.0
    %1062 = vmatpush1.msra.mxu0 0.0
    %1063 = vmatprep.subr.mxu0 0.0
    %1064 = vmatpush1.msra.mxu0 0.0
    %1065 = vmatprep.subr.mxu0 0.0
    %1066 = vmatpush1.msra.mxu0 0.0
    %1067 = vmatprep.subr.mxu0 0.0
    %1068 = vmatpush1.msra.mxu0 0.0
    %1069 = vmatprep.subr.mxu0 0.0
    %1070 = vmatpush1.msra.mxu0 0.0
    %1071 = vmatprep.mubr.f32.mxu0 0.0
    %1072 = vmatmul.mubr.f32.gmra.mrb[0].mxu0 %v1005
    %v1073 = vpop.f32.mrb[0].mxu0
    %v1074 = vadd.f32 %v916, %v1073
    %v1075 = vpop.f32.mrb[0].mxu0
    %1076 = vdwg.mxu0
    %v1078 = vsel %vm543, %v827, 0
    %1080 = vmatprep.subr.mxu0 0.0
    %1081 = vmatpush1.msra.mxu0 %v334
    %1082 = vmatprep.subr.mxu0 0.0
    %1083 = vmatpush1.msra.mxu0 %v337
    %1084 = vmatprep.subr.mxu0 0.0
    %1085 = vmatpush1.msra.mxu0 %v342
    %1086 = vmatprep.subr.mxu0 0.0
    %1087 = vmatpush1.msra.mxu0 %v345
    %1088 = vmatprep.subr.mxu0 0.0
    %1089 = vmatpush1.msra.mxu0 0.0
    %1090 = vmatprep.subr.mxu0 0.0
    %1091 = vmatpush1.msra.mxu0 0.0
    %1092 = vmatprep.subr.mxu0 0.0
    %1093 = vmatpush1.msra.mxu0 0.0
    %1094 = vmatprep.subr.mxu0 0.0
    %1095 = vmatpush1.msra.mxu0 0.0
    %1096 = vmatprep.subr.mxu0 0.0
    %1097 = vmatpush1.msra.mxu0 0.0
    %1098 = vmatprep.subr.mxu0 0.0
    %1099 = vmatpush1.msra.mxu0 0.0
    %1100 = vmatprep.subr.mxu0 0.0
    %1101 = vmatpush1.msra.mxu0 0.0
    %1102 = vmatprep.subr.mxu0 0.0
    %1103 = vmatpush1.msra.mxu0 0.0
    %1104 = vmatprep.subr.mxu0 0.0
    %1105 = vmatpush1.msra.mxu0 0.0
    %1106 = vmatprep.subr.mxu0 0.0
    %1107 = vmatpush1.msra.mxu0 0.0
    %1108 = vmatprep.subr.mxu0 0.0
    %1109 = vmatpush1.msra.mxu0 0.0
    %1110 = vmatprep.subr.mxu0 0.0
    %1111 = vmatpush1.msra.mxu0 0.0
    %1112 = vmatprep.subr.mxu0 0.0
    %1113 = vmatpush1.msra.mxu0 0.0
    %1114 = vmatprep.subr.mxu0 0.0
    %1115 = vmatpush1.msra.mxu0 0.0
    %1116 = vmatprep.subr.mxu0 0.0
    %1117 = vmatpush1.msra.mxu0 0.0
    %1118 = vmatprep.subr.mxu0 0.0
    %1119 = vmatpush1.msra.mxu0 0.0
    %1120 = vmatprep.subr.mxu0 0.0
    %1121 = vmatpush1.msra.mxu0 0.0
    %1122 = vmatprep.subr.mxu0 0.0
    %1123 = vmatpush1.msra.mxu0 0.0
    %1124 = vmatprep.subr.mxu0 0.0
    %1125 = vmatpush1.msra.mxu0 0.0
    %1126 = vmatprep.subr.mxu0 0.0
    %1127 = vmatpush1.msra.mxu0 0.0
    %1128 = vmatprep.subr.mxu0 0.0
    %1129 = vmatpush1.msra.mxu0 0.0
    %1130 = vmatprep.subr.mxu0 0.0
    %1131 = vmatpush1.msra.mxu0 0.0
    %1132 = vmatprep.subr.mxu0 0.0
    %1133 = vmatpush1.msra.mxu0 0.0
    %1134 = vmatprep.subr.mxu0 0.0
    %1135 = vmatpush1.msra.mxu0 0.0
    %1136 = vmatprep.subr.mxu0 0.0
    %1137 = vmatpush1.msra.mxu0 0.0
    %1138 = vmatprep.subr.mxu0 0.0
    %1139 = vmatpush1.msra.mxu0 0.0
    %1140 = vmatprep.subr.mxu0 0.0
    %1141 = vmatpush1.msra.mxu0 0.0
    %1142 = vmatprep.subr.mxu0 0.0
    %1143 = vmatpush1.msra.mxu0 0.0
    %1144 = vmatprep.mubr.f32.mxu0 0.0
    %1145 = vmatmul.mubr.f32.gmra.mrb[0].mxu0 %v1078
    %v1146 = vpop.f32.mrb[0].mxu0
    %v1147 = vadd.f32 %v923, %v1146
    %v1148 = vpop.f32.mrb[0].mxu0
    %1149 = vdwg.mxu0
    %v1151 = vsel %vm543, %v829, 0
    %1153 = vmatprep.subr.mxu0 0.0
    %1154 = vmatpush1.msra.mxu0 %v350
    %1155 = vmatprep.subr.mxu0 0.0
    %1156 = vmatpush1.msra.mxu0 %v353
    %1157 = vmatprep.subr.mxu0 0.0
    %1158 = vmatpush1.msra.mxu0 %v358
    %1159 = vmatprep.subr.mxu0 0.0
    %1160 = vmatpush1.msra.mxu0 %v361
    %1161 = vmatprep.subr.mxu0 0.0
    %1162 = vmatpush1.msra.mxu0 0.0
    %1163 = vmatprep.subr.mxu0 0.0
    %1164 = vmatpush1.msra.mxu0 0.0
    %1165 = vmatprep.subr.mxu0 0.0
    %1166 = vmatpush1.msra.mxu0 0.0
    %1167 = vmatprep.subr.mxu0 0.0
    %1168 = vmatpush1.msra.mxu0 0.0
    %1169 = vmatprep.subr.mxu0 0.0
    %1170 = vmatpush1.msra.mxu0 0.0
    %1171 = vmatprep.subr.mxu0 0.0
    %1172 = vmatpush1.msra.mxu0 0.0
    %1173 = vmatprep.subr.mxu0 0.0
    %1174 = vmatpush1.msra.mxu0 0.0
    %1175 = vmatprep.subr.mxu0 0.0
    %1176 = vmatpush1.msra.mxu0 0.0
    %1177 = vmatprep.subr.mxu0 0.0
    %1178 = vmatpush1.msra.mxu0 0.0
    %1179 = vmatprep.subr.mxu0 0.0
    %1180 = vmatpush1.msra.mxu0 0.0
    %1181 = vmatprep.subr.mxu0 0.0
    %1182 = vmatpush1.msra.mxu0 0.0
    %1183 = vmatprep.subr.mxu0 0.0
    %1184 = vmatpush1.msra.mxu0 0.0
    %1185 = vmatprep.subr.mxu0 0.0
    %1186 = vmatpush1.msra.mxu0 0.0
    %1187 = vmatprep.subr.mxu0 0.0
    %1188 = vmatpush1.msra.mxu0 0.0
    %1189 = vmatprep.subr.mxu0 0.0
    %1190 = vmatpush1.msra.mxu0 0.0
    %1191 = vmatprep.subr.mxu0 0.0
    %1192 = vmatpush1.msra.mxu0 0.0
    %1193 = vmatprep.subr.mxu0 0.0
    %1194 = vmatpush1.msra.mxu0 0.0
    %1195 = vmatprep.subr.mxu0 0.0
    %1196 = vmatpush1.msra.mxu0 0.0
    %1197 = vmatprep.subr.mxu0 0.0
    %1198 = vmatpush1.msra.mxu0 0.0
    %1199 = vmatprep.subr.mxu0 0.0
    %1200 = vmatpush1.msra.mxu0 0.0
    %1201 = vmatprep.subr.mxu0 0.0
    %1202 = vmatpush1.msra.mxu0 0.0
    %1203 = vmatprep.subr.mxu0 0.0
    %1204 = vmatpush1.msra.mxu0 0.0
    %1205 = vmatprep.subr.mxu0 0.0
    %1206 = vmatpush1.msra.mxu0 0.0
    %1207 = vmatprep.subr.mxu0 0.0
    %1208 = vmatpush1.msra.mxu0 0.0
    %1209 = vmatprep.subr.mxu0 0.0
    %1210 = vmatpush1.msra.mxu0 0.0
    %1211 = vmatprep.subr.mxu0 0.0
    %1212 = vmatpush1.msra.mxu0 0.0
    %1213 = vmatprep.subr.mxu0 0.0
    %1214 = vmatpush1.msra.mxu0 0.0
    %1215 = vmatprep.subr.mxu0 0.0
    %1216 = vmatpush1.msra.mxu0 0.0
    %1217 = vmatprep.mubr.f32.mxu0 0.0
    %1218 = vmatmul.mubr.f32.gmra.mrb[0].mxu0 %v1151
    %v1219 = vpop.f32.mrb[0].mxu0
    %v1220 = vadd.f32 %v930, %v1219
    %v1221 = vpop.f32.mrb[0].mxu0
    %1222 = vdwg.mxu0
    %v1223 = vmax.f32 %v1001, 0.0
    %v1224 = vmax.f32 %v1074, 0.0
    %v1225 = vmax.f32 %v1147, 0.0
    %v1226 = vmax.f32 %v1220, 0.0
    %v1227 = vld [vmem:[%s7] sm:$0x3]
    %v1228 = vld [vmem:[%s8] sm:$0x1]
    %v1229 = vld [vmem:[%s9] sm:$0x1]
    %vm1230 = vcmask 123904
    %v1231 = vsel %vm1230, %v1223, 0.0
    %1232 = vadd.xlane.f32.xlu0 %v1231
    %v1233 = vpop.xlane.xlu0 %1232
    %v1234 = vsel %vm1230, %v1224, 0.0
    %1235 = vadd.xlane.f32.xlu0 %v1234
    %v1236 = vpop.xlane.xlu0 %1235
    %v1237 = vsel %vm1230, %v1225, 0.0
    %1238 = vadd.xlane.f32.xlu0 %v1237
    %v1239 = vpop.xlane.xlu0 %1238
    %v1240 = vsel %vm1230, %v1226, 0.0
    %1241 = vadd.xlane.f32.xlu0 %v1240
    %v1242 = vpop.xlane.xlu0 %1241
    %v1243 = vmul.f32 %v1233, %v420
    %v1244 = vmul.f32 %v1236, %v420
    %v1245 = vmul.f32 %v1239, %v420
    %v1246 = vmul.f32 %v1242, %v420
    %v1251 = vlaneseq
    %v1252 = vshrl.u32 %v1251, 7
    %v1253 = vsub.s32 %v454, %v1252
    %v1254 = vrot.slane %v1243, %v1253
    %v1255 = vlaneseq
    %v1256 = vshrl.u32 %v1255, 7
    %v1257 = vsub.s32 %v454, %v1256
    %v1258 = vrot.slane %v1244, %v1257
    %v1259 = vlaneseq
    %v1260 = vshrl.u32 %v1259, 7
    %v1261 = vsub.s32 %v454, %v1260
    %v1262 = vrot.slane %v1245, %v1261
    %v1263 = vlaneseq
    %v1264 = vshrl.u32 %v1263, 7
    %v1265 = vsub.s32 %v454, %v1264
    %v1266 = vrot.slane %v1246, %v1265
    %v1267 = vsel %vm537, %v1258, %v1254
    %v1268 = vsel %vm539, %v1262, %v1267
    %v1269 = vsel %vm541, %v1266, %v1268
    %vm1270 = vcmask 15360
    %v1271 = vsel %vm1270, %v1269, 0
    %vm1273 = vcmask 1041408
    %v1275 = vsel %vm1273, %v1227, 0
    %1277 = vmatprep.subr.mxu0 0.0
    %1278 = vmatpush1.msra.mxu0 %v1275
    %1279 = vmatprep.subr.mxu0 0.0
    %1280 = vmatpush1.msra.mxu0 0.0
    %1281 = vmatprep.subr.mxu0 0.0
    %1282 = vmatpush1.msra.mxu0 0.0
    %1283 = vmatprep.subr.mxu0 0.0
    %1284 = vmatpush1.msra.mxu0 0.0
    %1285 = vmatprep.subr.mxu0 0.0
    %1286 = vmatpush1.msra.mxu0 0.0
    %1287 = vmatprep.subr.mxu0 0.0
    %1288 = vmatpush1.msra.mxu0 0.0
    %1289 = vmatprep.subr.mxu0 0.0
    %1290 = vmatpush1.msra.mxu0 0.0
    %1291 = vmatprep.subr.mxu0 0.0
    %1292 = vmatpush1.msra.mxu0 0.0
    %1293 = vmatprep.subr.mxu0 0.0
    %1294 = vmatpush1.msra.mxu0 0.0
    %1295 = vmatprep.subr.mxu0 0.0
    %1296 = vmatpush1.msra.mxu0 0.0
    %1297 = vmatprep.subr.mxu0 0.0
    %1298 = vmatpush1.msra.mxu0 0.0
    %1299 = vmatprep.subr.mxu0 0.0
    %1300 = vmatpush1.msra.mxu0 0.0
    %1301 = vmatprep.subr.mxu0 0.0
    %1302 = vmatpush1.msra.mxu0 0.0
    %1303 = vmatprep.subr.mxu0 0.0
    %1304 = vmatpush1.msra.mxu0 0.0
    %1305 = vmatprep.subr.mxu0 0.0
    %1306 = vmatpush1.msra.mxu0 0.0
    %1307 = vmatprep.subr.mxu0 0.0
    %1308 = vmatpush1.msra.mxu0 0.0
    %1309 = vmatprep.subr.mxu0 0.0
    %1310 = vmatpush1.msra.mxu0 0.0
    %1311 = vmatprep.subr.mxu0 0.0
    %1312 = vmatpush1.msra.mxu0 0.0
    %1313 = vmatprep.subr.mxu0 0.0
    %1314 = vmatpush1.msra.mxu0 0.0
    %1315 = vmatprep.subr.mxu0 0.0
    %1316 = vmatpush1.msra.mxu0 0.0
    %1317 = vmatprep.subr.mxu0 0.0
    %1318 = vmatpush1.msra.mxu0 0.0
    %1319 = vmatprep.subr.mxu0 0.0
    %1320 = vmatpush1.msra.mxu0 0.0
    %1321 = vmatprep.subr.mxu0 0.0
    %1322 = vmatpush1.msra.mxu0 0.0
    %1323 = vmatprep.subr.mxu0 0.0
    %1324 = vmatpush1.msra.mxu0 0.0
    %1325 = vmatprep.subr.mxu0 0.0
    %1326 = vmatpush1.msra.mxu0 0.0
    %1327 = vmatprep.subr.mxu0 0.0
    %1328 = vmatpush1.msra.mxu0 0.0
    %1329 = vmatprep.subr.mxu0 0.0
    %1330 = vmatpush1.msra.mxu0 0.0
    %1331 = vmatprep.subr.mxu0 0.0
    %1332 = vmatpush1.msra.mxu0 0.0
    %1333 = vmatprep.subr.mxu0 0.0
    %1334 = vmatpush1.msra.mxu0 0.0
    %1335 = vmatprep.subr.mxu0 0.0
    %1336 = vmatpush1.msra.mxu0 0.0
    %1337 = vmatprep.subr.mxu0 0.0
    %1338 = vmatpush1.msra.mxu0 0.0
    %1339 = vmatprep.subr.mxu0 0.0
    %1340 = vmatpush1.msra.mxu0 0.0
    %1341 = vmatprep.mubr.f32.mxu0 0.0
    %1342 = vmatmul.mubr.f32.gmra.mrb[0].mxu0 %v1271
    %v1343 = vpop.f32.mrb[0].mxu0
    %v1344 = vadd.f32 0.0, %v1343
    %v1345 = vpop.f32.mrb[0].mxu0
    %1346 = vdwg.mxu0
    %v1347 = vmax.f32 %v1344, 0.0
    %v1349 = vlaneseq
    %v1350 = vshrl.u32 %v1349, 7
    %v1351 = vsub.s32 0, %v1350
    %v1352 = vrot.slane %v1229, %v1351
    %vm1354 = vcmask 7168
    %v1356 = vsel %vm1354, %v1347, 0
    %v1359 = vsel %vm627, %v1228, 0
    %1361 = vmatprep.subr.mxu0 0.0
    %1362 = vmatpush1.msra.mxu0 %v1359
    %1363 = vmatprep.subr.mxu0 0.0
    %1364 = vmatpush1.msra.mxu0 0.0
    %1365 = vmatprep.subr.mxu0 0.0
    %1366 = vmatpush1.msra.mxu0 0.0
    %1367 = vmatprep.subr.mxu0 0.0
    %1368 = vmatpush1.msra.mxu0 0.0
    %1369 = vmatprep.subr.mxu0 0.0
    %1370 = vmatpush1.msra.mxu0 0.0
    %1371 = vmatprep.subr.mxu0 0.0
    %1372 = vmatpush1.msra.mxu0 0.0
    %1373 = vmatprep.subr.mxu0 0.0
    %1374 = vmatpush1.msra.mxu0 0.0
    %1375 = vmatprep.subr.mxu0 0.0
    %1376 = vmatpush1.msra.mxu0 0.0
    %1377 = vmatprep.subr.mxu0 0.0
    %1378 = vmatpush1.msra.mxu0 0.0
    %1379 = vmatprep.subr.mxu0 0.0
    %1380 = vmatpush1.msra.mxu0 0.0
    %1381 = vmatprep.subr.mxu0 0.0
    %1382 = vmatpush1.msra.mxu0 0.0
    %1383 = vmatprep.subr.mxu0 0.0
    %1384 = vmatpush1.msra.mxu0 0.0
    %1385 = vmatprep.subr.mxu0 0.0
    %1386 = vmatpush1.msra.mxu0 0.0
    %1387 = vmatprep.subr.mxu0 0.0
    %1388 = vmatpush1.msra.mxu0 0.0
    %1389 = vmatprep.subr.mxu0 0.0
    %1390 = vmatpush1.msra.mxu0 0.0
    %1391 = vmatprep.subr.mxu0 0.0
    %1392 = vmatpush1.msra.mxu0 0.0
    %1393 = vmatprep.subr.mxu0 0.0
    %1394 = vmatpush1.msra.mxu0 0.0
    %1395 = vmatprep.subr.mxu0 0.0
    %1396 = vmatpush1.msra.mxu0 0.0
    %1397 = vmatprep.subr.mxu0 0.0
    %1398 = vmatpush1.msra.mxu0 0.0
    %1399 = vmatprep.subr.mxu0 0.0
    %1400 = vmatpush1.msra.mxu0 0.0
    %1401 = vmatprep.subr.mxu0 0.0
    %1402 = vmatpush1.msra.mxu0 0.0
    %1403 = vmatprep.subr.mxu0 0.0
    %1404 = vmatpush1.msra.mxu0 0.0
    %1405 = vmatprep.subr.mxu0 0.0
    %1406 = vmatpush1.msra.mxu0 0.0
    %1407 = vmatprep.subr.mxu0 0.0
    %1408 = vmatpush1.msra.mxu0 0.0
    %1409 = vmatprep.subr.mxu0 0.0
    %1410 = vmatpush1.msra.mxu0 0.0
    %1411 = vmatprep.subr.mxu0 0.0
    %1412 = vmatpush1.msra.mxu0 0.0
    %1413 = vmatprep.subr.mxu0 0.0
    %1414 = vmatpush1.msra.mxu0 0.0
    %1415 = vmatprep.subr.mxu0 0.0
    %1416 = vmatpush1.msra.mxu0 0.0
    %1417 = vmatprep.subr.mxu0 0.0
    %1418 = vmatpush1.msra.mxu0 0.0
    %1419 = vmatprep.subr.mxu0 0.0
    %1420 = vmatpush1.msra.mxu0 0.0
    %1421 = vmatprep.subr.mxu0 0.0
    %1422 = vmatpush1.msra.mxu0 0.0
    %1423 = vmatprep.subr.mxu0 0.0
    %1424 = vmatpush1.msra.mxu0 0.0
    %1425 = vmatprep.mubr.f32.mxu0 0.0
    %1426 = vmatmul.mubr.f32.gmra.mrb[0].mxu0 %v1356
    %v1427 = vpop.f32.mrb[0].mxu0
    %v1428 = vadd.f32 %v1352, %v1427
    %v1429 = vpop.f32.mrb[0].mxu0
    %1430 = vdwg.mxu0
    %v1431 = vmul.f32 %v1428, 0.029411765
    %v1432 = vsel %vm702, %v1431, -inf
    %1433 = vmax.xlane.f32.xlu0 %v1432
    %v1434 = vpop.xlane.xlu0 %1433
    %v1435 = vsub.f32 %v1431, %v1434
    %v1436 = vmul.f32 %v1435, 1.442695
    %v1437 = vpow.pop %v1436
    %v1438 = vsel %vm702, %v1437, 0.0
    %1439 = vadd.xlane.f32.xlu0 %v1438
    %v1440 = vpop.xlane.xlu0 %1439
    %v1441 = vrcp.pop %v1440
    %v1442 = vmul.f32 %v1437, %v1441
    %v1443 = vld [vmem:[%s10] sm:$0xf]
    %v1444 = vld [vmem:[%s11] sm:$0xf]
    %v1446 = vsel %vm716, %v1442, 0
    %v1449 = vsel %vm720, %v1443, 0
    %1451 = vmatprep.subr.mxu0 0.0
    %1452 = vmatpush1.msra.mxu0 %v1449
    %1453 = vmatprep.subr.mxu0 0.0
    %1454 = vmatpush1.msra.mxu0 0.0
    %1455 = vmatprep.subr.mxu0 0.0
    %1456 = vmatpush1.msra.mxu0 0.0
    %1457 = vmatprep.subr.mxu0 0.0
    %1458 = vmatpush1.msra.mxu0 0.0
    %1459 = vmatprep.subr.mxu0 0.0
    %1460 = vmatpush1.msra.mxu0 0.0
    %1461 = vmatprep.subr.mxu0 0.0
    %1462 = vmatpush1.msra.mxu0 0.0
    %1463 = vmatprep.subr.mxu0 0.0
    %1464 = vmatpush1.msra.mxu0 0.0
    %1465 = vmatprep.subr.mxu0 0.0
    %1466 = vmatpush1.msra.mxu0 0.0
    %1467 = vmatprep.subr.mxu0 0.0
    %1468 = vmatpush1.msra.mxu0 0.0
    %1469 = vmatprep.subr.mxu0 0.0
    %1470 = vmatpush1.msra.mxu0 0.0
    %1471 = vmatprep.subr.mxu0 0.0
    %1472 = vmatpush1.msra.mxu0 0.0
    %1473 = vmatprep.subr.mxu0 0.0
    %1474 = vmatpush1.msra.mxu0 0.0
    %1475 = vmatprep.subr.mxu0 0.0
    %1476 = vmatpush1.msra.mxu0 0.0
    %1477 = vmatprep.subr.mxu0 0.0
    %1478 = vmatpush1.msra.mxu0 0.0
    %1479 = vmatprep.subr.mxu0 0.0
    %1480 = vmatpush1.msra.mxu0 0.0
    %1481 = vmatprep.subr.mxu0 0.0
    %1482 = vmatpush1.msra.mxu0 0.0
    %1483 = vmatprep.subr.mxu0 0.0
    %1484 = vmatpush1.msra.mxu0 0.0
    %1485 = vmatprep.subr.mxu0 0.0
    %1486 = vmatpush1.msra.mxu0 0.0
    %1487 = vmatprep.subr.mxu0 0.0
    %1488 = vmatpush1.msra.mxu0 0.0
    %1489 = vmatprep.subr.mxu0 0.0
    %1490 = vmatpush1.msra.mxu0 0.0
    %1491 = vmatprep.subr.mxu0 0.0
    %1492 = vmatpush1.msra.mxu0 0.0
    %1493 = vmatprep.subr.mxu0 0.0
    %1494 = vmatpush1.msra.mxu0 0.0
    %1495 = vmatprep.subr.mxu0 0.0
    %1496 = vmatpush1.msra.mxu0 0.0
    %1497 = vmatprep.subr.mxu0 0.0
    %1498 = vmatpush1.msra.mxu0 0.0
    %1499 = vmatprep.subr.mxu0 0.0
    %1500 = vmatpush1.msra.mxu0 0.0
    %1501 = vmatprep.subr.mxu0 0.0
    %1502 = vmatpush1.msra.mxu0 0.0
    %1503 = vmatprep.subr.mxu0 0.0
    %1504 = vmatpush1.msra.mxu0 0.0
    %1505 = vmatprep.subr.mxu0 0.0
    %1506 = vmatpush1.msra.mxu0 0.0
    %1507 = vmatprep.subr.mxu0 0.0
    %1508 = vmatpush1.msra.mxu0 0.0
    %1509 = vmatprep.subr.mxu0 0.0
    %1510 = vmatpush1.msra.mxu0 0.0
    %1511 = vmatprep.subr.mxu0 0.0
    %1512 = vmatpush1.msra.mxu0 0.0
    %1513 = vmatprep.subr.mxu0 0.0
    %1514 = vmatpush1.msra.mxu0 0.0
    %1515 = vmatprep.mubr.f32.mxu0 0.0
    %1516 = vmatmul.mubr.f32.gmra.mrb[0].mxu0 %v1446
    %v1517 = vpop.f32.mrb[0].mxu0
    %v1518 = vadd.f32 0.0, %v1517
    %v1519 = vpop.f32.mrb[0].mxu0
    %1520 = vdwg.mxu0
    %1522 = vrot.lane.b32.xlu0 %v1518, 126
    %v1523 = vpop.permute.xlu0 %1522
    %1525 = vrot.lane.b32.xlu0 %v1518, 124
    %v1526 = vpop.permute.xlu0 %1525
    %1528 = vrot.lane.b32.xlu0 %v1518, 122
    %v1529 = vpop.permute.xlu0 %1528
    %1531 = vrot.lane.b32.xlu0 %v1518, 120
    %v1532 = vpop.permute.xlu0 %1531
    %1534 = vrot.lane.b32.xlu0 %v1518, 118
    %v1535 = vpop.permute.xlu0 %1534
    %1537 = vrot.lane.b32.xlu0 %v1518, 116
    %v1538 = vpop.permute.xlu0 %1537
    %1540 = vrot.lane.b32.xlu0 %v1518, 114
    %v1541 = vpop.permute.xlu0 %1540
    %1543 = vrot.lane.b32.xlu0 %v1518, 112
    %v1544 = vpop.permute.xlu0 %1543
    %1546 = vrot.lane.b32.xlu0 %v1518, 110
    %v1547 = vpop.permute.xlu0 %1546
    %1549 = vrot.lane.b32.xlu0 %v1518, 108
    %v1550 = vpop.permute.xlu0 %1549
    %1552 = vrot.lane.b32.xlu0 %v1518, 106
    %v1553 = vpop.permute.xlu0 %1552
    %1555 = vrot.lane.b32.xlu0 %v1518, 104
    %v1556 = vpop.permute.xlu0 %1555
    %1558 = vrot.lane.b32.xlu0 %v1518, 102
    %v1559 = vpop.permute.xlu0 %1558
    %1561 = vrot.lane.b32.xlu0 %v1518, 100
    %v1562 = vpop.permute.xlu0 %1561
    %1564 = vrot.lane.b32.xlu0 %v1518, 98
    %v1565 = vpop.permute.xlu0 %1564
    %1567 = vrot.lane.b32.xlu0 %v1518, 96
    %v1568 = vpop.permute.xlu0 %1567
    %1570 = vrot.lane.b32.xlu0 %v1518, 94
    %v1571 = vpop.permute.xlu0 %1570
    %1573 = vrot.lane.b32.xlu0 %v1518, 92
    %v1574 = vpop.permute.xlu0 %1573
    %1576 = vrot.lane.b32.xlu0 %v1518, 90
    %v1577 = vpop.permute.xlu0 %1576
    %1579 = vrot.lane.b32.xlu0 %v1518, 88
    %v1580 = vpop.permute.xlu0 %1579
    %1582 = vrot.lane.b32.xlu0 %v1518, 86
    %v1583 = vpop.permute.xlu0 %1582
    %1585 = vrot.lane.b32.xlu0 %v1518, 84
    %v1586 = vpop.permute.xlu0 %1585
    %1588 = vrot.lane.b32.xlu0 %v1518, 82
    %v1589 = vpop.permute.xlu0 %1588
    %1591 = vrot.lane.b32.xlu0 %v1518, 80
    %v1592 = vpop.permute.xlu0 %1591
    %1594 = vrot.lane.b32.xlu0 %v1518, 78
    %v1595 = vpop.permute.xlu0 %1594
    %1597 = vrot.lane.b32.xlu0 %v1518, 76
    %v1598 = vpop.permute.xlu0 %1597
    %1600 = vrot.lane.b32.xlu0 %v1518, 74
    %v1601 = vpop.permute.xlu0 %1600
    %1603 = vrot.lane.b32.xlu0 %v1518, 72
    %v1604 = vpop.permute.xlu0 %1603
    %1606 = vrot.lane.b32.xlu0 %v1518, 70
    %v1607 = vpop.permute.xlu0 %1606
    %1609 = vrot.lane.b32.xlu0 %v1518, 68
    %v1610 = vpop.permute.xlu0 %1609
    %1612 = vrot.lane.b32.xlu0 %v1518, 66
    %v1613 = vpop.permute.xlu0 %1612
    %v1615 = vcombine.low %v1518, %v1526
    %v1617 = vunpack.c.l.s4 1983009808
    %v1618 = vunpack.c.0.s8 %v1617
    %v1619 = vlaneseq
    %v1620 = vshrl.u32 %v1619, 7
    %v1621 = vsub.s32 %v1618, %v1620
    %v1622 = vrot.slane %v1615, %v1621
    %v1623 = vcombine.low %v1523, %v1529
    %v1625 = vunpack.c.l.s4 1983009808
    %v1626 = vunpack.c.0.s8 %v1625
    %v1627 = vlaneseq
    %v1628 = vshrl.u32 %v1627, 7
    %v1629 = vsub.s32 %v1626, %v1628
    %v1630 = vrot.slane %v1623, %v1629
    %v1631 = vcombine.low %v1532, %v1538
    %v1633 = vunpack.c.l.s4 1983009808
    %v1634 = vunpack.c.0.s8 %v1633
    %v1635 = vlaneseq
    %v1636 = vshrl.u32 %v1635, 7
    %v1637 = vsub.s32 %v1634, %v1636
    %v1638 = vrot.slane %v1631, %v1637
    %v1639 = vcombine.low %v1535, %v1541
    %v1641 = vunpack.c.l.s4 1983009808
    %v1642 = vunpack.c.0.s8 %v1641
    %v1643 = vlaneseq
    %v1644 = vshrl.u32 %v1643, 7
    %v1645 = vsub.s32 %v1642, %v1644
    %v1646 = vrot.slane %v1639, %v1645
    %v1647 = vcombine.low %v1622, %v1630
    %v1648 = vcombine.high %v1622, %v1630
    %v1650 = vunpack.c.l.s4 1934713408
    %v1651 = vunpack.c.0.s8 %v1650
    %v1652 = vlaneseq
    %v1653 = vshrl.u32 %v1652, 7
    %v1654 = vsub.s32 %v1651, %v1653
    %v1655 = vrot.slane %v1647, %v1654
    %v1657 = vunpack.c.l.s4 1934713408
    %v1658 = vunpack.c.0.s8 %v1657
    %v1659 = vlaneseq
    %v1660 = vshrl.u32 %v1659, 7
    %v1661 = vsub.s32 %v1658, %v1660
    %v1662 = vrot.slane %v1648, %v1661
    %v1663 = vcombine.low %v1638, %v1646
    %v1664 = vcombine.high %v1638, %v1646
    %v1666 = vunpack.c.l.s4 1934713408
    %v1667 = vunpack.c.0.s8 %v1666
    %v1668 = vlaneseq
    %v1669 = vshrl.u32 %v1668, 7
    %v1670 = vsub.s32 %v1667, %v1669
    %v1671 = vrot.slane %v1663, %v1670
    %v1673 = vunpack.c.l.s4 1934713408
    %v1674 = vunpack.c.0.s8 %v1673
    %v1675 = vlaneseq
    %v1676 = vshrl.u32 %v1675, 7
    %v1677 = vsub.s32 %v1674, %v1676
    %v1678 = vrot.slane %v1664, %v1677
    %v1679 = vcombine.low %v1655, %v1671
    %v1680 = vcombine.high %v1655, %v1671
    %v1681 = vcombine.low %v1662, %v1678
    %v1682 = vcombine.high %v1662, %v1678
    %v1683 = vcombine.low %v1544, %v1550
    %v1685 = vunpack.c.l.s4 1983009808
    %v1686 = vunpack.c.0.s8 %v1685
    %v1687 = vlaneseq
    %v1688 = vshrl.u32 %v1687, 7
    %v1689 = vsub.s32 %v1686, %v1688
    %v1690 = vrot.slane %v1683, %v1689
    %v1691 = vcombine.low %v1547, %v1553
    %v1693 = vunpack.c.l.s4 1983009808
    %v1694 = vunpack.c.0.s8 %v1693
    %v1695 = vlaneseq
    %v1696 = vshrl.u32 %v1695, 7
    %v1697 = vsub.s32 %v1694, %v1696
    %v1698 = vrot.slane %v1691, %v1697
    %v1699 = vcombine.low %v1556, %v1562
    %v1701 = vunpack.c.l.s4 1983009808
    %v1702 = vunpack.c.0.s8 %v1701
    %v1703 = vlaneseq
    %v1704 = vshrl.u32 %v1703, 7
    %v1705 = vsub.s32 %v1702, %v1704
    %v1706 = vrot.slane %v1699, %v1705
    %v1707 = vcombine.low %v1559, %v1565
    %v1709 = vunpack.c.l.s4 1983009808
    %v1710 = vunpack.c.0.s8 %v1709
    %v1711 = vlaneseq
    %v1712 = vshrl.u32 %v1711, 7
    %v1713 = vsub.s32 %v1710, %v1712
    %v1714 = vrot.slane %v1707, %v1713
    %v1715 = vcombine.low %v1690, %v1698
    %v1716 = vcombine.high %v1690, %v1698
    %v1718 = vunpack.c.l.s4 1934713408
    %v1719 = vunpack.c.0.s8 %v1718
    %v1720 = vlaneseq
    %v1721 = vshrl.u32 %v1720, 7
    %v1722 = vsub.s32 %v1719, %v1721
    %v1723 = vrot.slane %v1715, %v1722
    %v1725 = vunpack.c.l.s4 1934713408
    %v1726 = vunpack.c.0.s8 %v1725
    %v1727 = vlaneseq
    %v1728 = vshrl.u32 %v1727, 7
    %v1729 = vsub.s32 %v1726, %v1728
    %v1730 = vrot.slane %v1716, %v1729
    %v1731 = vcombine.low %v1706, %v1714
    %v1732 = vcombine.high %v1706, %v1714
    %v1734 = vunpack.c.l.s4 1934713408
    %v1735 = vunpack.c.0.s8 %v1734
    %v1736 = vlaneseq
    %v1737 = vshrl.u32 %v1736, 7
    %v1738 = vsub.s32 %v1735, %v1737
    %v1739 = vrot.slane %v1731, %v1738
    %v1741 = vunpack.c.l.s4 1934713408
    %v1742 = vunpack.c.0.s8 %v1741
    %v1743 = vlaneseq
    %v1744 = vshrl.u32 %v1743, 7
    %v1745 = vsub.s32 %v1742, %v1744
    %v1746 = vrot.slane %v1732, %v1745
    %v1747 = vcombine.low %v1723, %v1739
    %v1748 = vcombine.high %v1723, %v1739
    %v1749 = vcombine.low %v1730, %v1746
    %v1750 = vcombine.high %v1730, %v1746
    %v1751 = vcombine.low %v1568, %v1574
    %v1753 = vunpack.c.l.s4 1983009808
    %v1754 = vunpack.c.0.s8 %v1753
    %v1755 = vlaneseq
    %v1756 = vshrl.u32 %v1755, 7
    %v1757 = vsub.s32 %v1754, %v1756
    %v1758 = vrot.slane %v1751, %v1757
    %v1759 = vcombine.low %v1571, %v1577
    %v1761 = vunpack.c.l.s4 1983009808
    %v1762 = vunpack.c.0.s8 %v1761
    %v1763 = vlaneseq
    %v1764 = vshrl.u32 %v1763, 7
    %v1765 = vsub.s32 %v1762, %v1764
    %v1766 = vrot.slane %v1759, %v1765
    %v1767 = vcombine.low %v1580, %v1586
    %v1769 = vunpack.c.l.s4 1983009808
    %v1770 = vunpack.c.0.s8 %v1769
    %v1771 = vlaneseq
    %v1772 = vshrl.u32 %v1771, 7
    %v1773 = vsub.s32 %v1770, %v1772
    %v1774 = vrot.slane %v1767, %v1773
    %v1775 = vcombine.low %v1583, %v1589
    %v1777 = vunpack.c.l.s4 1983009808
    %v1778 = vunpack.c.0.s8 %v1777
    %v1779 = vlaneseq
    %v1780 = vshrl.u32 %v1779, 7
    %v1781 = vsub.s32 %v1778, %v1780
    %v1782 = vrot.slane %v1775, %v1781
    %v1783 = vcombine.low %v1758, %v1766
    %v1784 = vcombine.high %v1758, %v1766
    %v1786 = vunpack.c.l.s4 1934713408
    %v1787 = vunpack.c.0.s8 %v1786
    %v1788 = vlaneseq
    %v1789 = vshrl.u32 %v1788, 7
    %v1790 = vsub.s32 %v1787, %v1789
    %v1791 = vrot.slane %v1783, %v1790
    %v1793 = vunpack.c.l.s4 1934713408
    %v1794 = vunpack.c.0.s8 %v1793
    %v1795 = vlaneseq
    %v1796 = vshrl.u32 %v1795, 7
    %v1797 = vsub.s32 %v1794, %v1796
    %v1798 = vrot.slane %v1784, %v1797
    %v1799 = vcombine.low %v1774, %v1782
    %v1800 = vcombine.high %v1774, %v1782
    %v1802 = vunpack.c.l.s4 1934713408
    %v1803 = vunpack.c.0.s8 %v1802
    %v1804 = vlaneseq
    %v1805 = vshrl.u32 %v1804, 7
    %v1806 = vsub.s32 %v1803, %v1805
    %v1807 = vrot.slane %v1799, %v1806
    %v1809 = vunpack.c.l.s4 1934713408
    %v1810 = vunpack.c.0.s8 %v1809
    %v1811 = vlaneseq
    %v1812 = vshrl.u32 %v1811, 7
    %v1813 = vsub.s32 %v1810, %v1812
    %v1814 = vrot.slane %v1800, %v1813
    %v1815 = vcombine.low %v1791, %v1807
    %v1816 = vcombine.high %v1791, %v1807
    %v1817 = vcombine.low %v1798, %v1814
    %v1818 = vcombine.high %v1798, %v1814
    %v1819 = vcombine.low %v1592, %v1598
    %v1821 = vunpack.c.l.s4 1983009808
    %v1822 = vunpack.c.0.s8 %v1821
    %v1823 = vlaneseq
    %v1824 = vshrl.u32 %v1823, 7
    %v1825 = vsub.s32 %v1822, %v1824
    %v1826 = vrot.slane %v1819, %v1825
    %v1827 = vcombine.low %v1595, %v1601
    %v1829 = vunpack.c.l.s4 1983009808
    %v1830 = vunpack.c.0.s8 %v1829
    %v1831 = vlaneseq
    %v1832 = vshrl.u32 %v1831, 7
    %v1833 = vsub.s32 %v1830, %v1832
    %v1834 = vrot.slane %v1827, %v1833
    %v1835 = vcombine.low %v1604, %v1610
    %v1837 = vunpack.c.l.s4 1983009808
    %v1838 = vunpack.c.0.s8 %v1837
    %v1839 = vlaneseq
    %v1840 = vshrl.u32 %v1839, 7
    %v1841 = vsub.s32 %v1838, %v1840
    %v1842 = vrot.slane %v1835, %v1841
    %v1843 = vcombine.low %v1607, %v1613
    %v1845 = vunpack.c.l.s4 1983009808
    %v1846 = vunpack.c.0.s8 %v1845
    %v1847 = vlaneseq
    %v1848 = vshrl.u32 %v1847, 7
    %v1849 = vsub.s32 %v1846, %v1848
    %v1850 = vrot.slane %v1843, %v1849
    %v1851 = vcombine.low %v1826, %v1834
    %v1852 = vcombine.high %v1826, %v1834
    %v1854 = vunpack.c.l.s4 1934713408
    %v1855 = vunpack.c.0.s8 %v1854
    %v1856 = vlaneseq
    %v1857 = vshrl.u32 %v1856, 7
    %v1858 = vsub.s32 %v1855, %v1857
    %v1859 = vrot.slane %v1851, %v1858
    %v1861 = vunpack.c.l.s4 1934713408
    %v1862 = vunpack.c.0.s8 %v1861
    %v1863 = vlaneseq
    %v1864 = vshrl.u32 %v1863, 7
    %v1865 = vsub.s32 %v1862, %v1864
    %v1866 = vrot.slane %v1852, %v1865
    %v1867 = vcombine.low %v1842, %v1850
    %v1868 = vcombine.high %v1842, %v1850
    %v1870 = vunpack.c.l.s4 1934713408
    %v1871 = vunpack.c.0.s8 %v1870
    %v1872 = vlaneseq
    %v1873 = vshrl.u32 %v1872, 7
    %v1874 = vsub.s32 %v1871, %v1873
    %v1875 = vrot.slane %v1867, %v1874
    %v1877 = vunpack.c.l.s4 1934713408
    %v1878 = vunpack.c.0.s8 %v1877
    %v1879 = vlaneseq
    %v1880 = vshrl.u32 %v1879, 7
    %v1881 = vsub.s32 %v1878, %v1880
    %v1882 = vrot.slane %v1868, %v1881
    %v1883 = vcombine.low %v1859, %v1875
    %v1884 = vcombine.high %v1859, %v1875
    %v1885 = vcombine.low %v1866, %v1882
    %v1886 = vcombine.high %v1866, %v1882
    %v1888 = vsel %vm720, %v1444, 0
    %1890 = vmatprep.subr.mxu0 0.0
    %1891 = vmatpush1.msra.mxu0 %v1888
    %1892 = vmatprep.subr.mxu0 0.0
    %1893 = vmatpush1.msra.mxu0 0.0
    %1894 = vmatprep.subr.mxu0 0.0
    %1895 = vmatpush1.msra.mxu0 0.0
    %1896 = vmatprep.subr.mxu0 0.0
    %1897 = vmatpush1.msra.mxu0 0.0
    %1898 = vmatprep.subr.mxu0 0.0
    %1899 = vmatpush1.msra.mxu0 0.0
    %1900 = vmatprep.subr.mxu0 0.0
    %1901 = vmatpush1.msra.mxu0 0.0
    %1902 = vmatprep.subr.mxu0 0.0
    %1903 = vmatpush1.msra.mxu0 0.0
    %1904 = vmatprep.subr.mxu0 0.0
    %1905 = vmatpush1.msra.mxu0 0.0
    %1906 = vmatprep.subr.mxu0 0.0
    %1907 = vmatpush1.msra.mxu0 0.0
    %1908 = vmatprep.subr.mxu0 0.0
    %1909 = vmatpush1.msra.mxu0 0.0
    %1910 = vmatprep.subr.mxu0 0.0
    %1911 = vmatpush1.msra.mxu0 0.0
    %1912 = vmatprep.subr.mxu0 0.0
    %1913 = vmatpush1.msra.mxu0 0.0
    %1914 = vmatprep.subr.mxu0 0.0
    %1915 = vmatpush1.msra.mxu0 0.0
    %1916 = vmatprep.subr.mxu0 0.0
    %1917 = vmatpush1.msra.mxu0 0.0
    %1918 = vmatprep.subr.mxu0 0.0
    %1919 = vmatpush1.msra.mxu0 0.0
    %1920 = vmatprep.subr.mxu0 0.0
    %1921 = vmatpush1.msra.mxu0 0.0
    %1922 = vmatprep.subr.mxu0 0.0
    %1923 = vmatpush1.msra.mxu0 0.0
    %1924 = vmatprep.subr.mxu0 0.0
    %1925 = vmatpush1.msra.mxu0 0.0
    %1926 = vmatprep.subr.mxu0 0.0
    %1927 = vmatpush1.msra.mxu0 0.0
    %1928 = vmatprep.subr.mxu0 0.0
    %1929 = vmatpush1.msra.mxu0 0.0
    %1930 = vmatprep.subr.mxu0 0.0
    %1931 = vmatpush1.msra.mxu0 0.0
    %1932 = vmatprep.subr.mxu0 0.0
    %1933 = vmatpush1.msra.mxu0 0.0
    %1934 = vmatprep.subr.mxu0 0.0
    %1935 = vmatpush1.msra.mxu0 0.0
    %1936 = vmatprep.subr.mxu0 0.0
    %1937 = vmatpush1.msra.mxu0 0.0
    %1938 = vmatprep.subr.mxu0 0.0
    %1939 = vmatpush1.msra.mxu0 0.0
    %1940 = vmatprep.subr.mxu0 0.0
    %1941 = vmatpush1.msra.mxu0 0.0
    %1942 = vmatprep.subr.mxu0 0.0
    %1943 = vmatpush1.msra.mxu0 0.0
    %1944 = vmatprep.subr.mxu0 0.0
    %1945 = vmatpush1.msra.mxu0 0.0
    %1946 = vmatprep.subr.mxu0 0.0
    %1947 = vmatpush1.msra.mxu0 0.0
    %1948 = vmatprep.subr.mxu0 0.0
    %1949 = vmatpush1.msra.mxu0 0.0
    %1950 = vmatprep.subr.mxu0 0.0
    %1951 = vmatpush1.msra.mxu0 0.0
    %1952 = vmatprep.subr.mxu0 0.0
    %1953 = vmatpush1.msra.mxu0 0.0
    %1954 = vmatprep.mubr.f32.mxu0 0.0
    %1955 = vmatmul.mubr.f32.gmra.mrb[0].mxu0 %v1446
    %v1956 = vpop.f32.mrb[0].mxu0
    %v1957 = vadd.f32 0.0, %v1956
    %v1958 = vpop.f32.mrb[0].mxu0
    %1959 = vdwg.mxu0
    %v1960 = vlaneseq
    %v1961 = vshrl.u32 %v1960, 7
    %v1962 = vsub.s32 0, %v1961
    %v1963 = vrot.slane %v1957, %v1962
    %1965 = vbcast.lane.b32.xlu0 %v1963, 256
    %v1966 = vpop.permute.xlu0 %1965
    %s1968 = sor.u32 256, 8
    %1969 = vbcast.lane.b32.xlu0 %v1963, %s1968
    %v1970 = vpop.permute.xlu0 %1969
    %s1972 = sor.u32 256, 16
    %1973 = vbcast.lane.b32.xlu0 %v1963, %s1972
    %v1974 = vpop.permute.xlu0 %1973
    %s1976 = sor.u32 256, 24
    %1977 = vbcast.lane.b32.xlu0 %v1963, %s1976
    %v1978 = vpop.permute.xlu0 %1977
    %v1979 = vlaneseq
    %v1980 = vshrl.u32 %v1979, 7
    %v1981 = vsub.s32 1, %v1980
    %v1982 = vrot.slane %v1957, %v1981
    %1984 = vbcast.lane.b32.xlu0 %v1982, 256
    %v1985 = vpop.permute.xlu0 %1984
    %s1987 = sor.u32 256, 8
    %1988 = vbcast.lane.b32.xlu0 %v1982, %s1987
    %v1989 = vpop.permute.xlu0 %1988
    %s1991 = sor.u32 256, 16
    %1992 = vbcast.lane.b32.xlu0 %v1982, %s1991
    %v1993 = vpop.permute.xlu0 %1992
    %s1995 = sor.u32 256, 24
    %1996 = vbcast.lane.b32.xlu0 %v1982, %s1995
    %v1997 = vpop.permute.xlu0 %1996
    %v1998 = vlaneseq
    %v1999 = vshrl.u32 %v1998, 7
    %v2000 = vsub.s32 2, %v1999
    %v2001 = vrot.slane %v1957, %v2000
    %2003 = vbcast.lane.b32.xlu0 %v2001, 256
    %v2004 = vpop.permute.xlu0 %2003
    %s2006 = sor.u32 256, 8
    %2007 = vbcast.lane.b32.xlu0 %v2001, %s2006
    %v2008 = vpop.permute.xlu0 %2007
    %s2010 = sor.u32 256, 16
    %2011 = vbcast.lane.b32.xlu0 %v2001, %s2010
    %v2012 = vpop.permute.xlu0 %2011
    %s2014 = sor.u32 256, 24
    %2015 = vbcast.lane.b32.xlu0 %v2001, %s2014
    %v2016 = vpop.permute.xlu0 %2015
    %v2017 = vlaneseq
    %v2018 = vshrl.u32 %v2017, 7
    %v2019 = vsub.s32 3, %v2018
    %v2020 = vrot.slane %v1957, %v2019
    %2022 = vbcast.lane.b32.xlu0 %v2020, 256
    %v2023 = vpop.permute.xlu0 %2022
    %s2025 = sor.u32 256, 8
    %2026 = vbcast.lane.b32.xlu0 %v2020, %s2025
    %v2027 = vpop.permute.xlu0 %2026
    %s2029 = sor.u32 256, 16
    %2030 = vbcast.lane.b32.xlu0 %v2020, %s2029
    %v2031 = vpop.permute.xlu0 %2030
    %s2033 = sor.u32 256, 24
    %2034 = vbcast.lane.b32.xlu0 %v2020, %s2033
    %v2035 = vpop.permute.xlu0 %2034
    %v2037 = vsel %vm1270, %v1679, 0
    %v2040 = vsel %vm1270, %v1747, 0
    %v2043 = vsel %vm1270, %v1815, 0
    %v2046 = vsel %vm1270, %v1883, 0
    %v2049 = vsel %vm1273, %v1223, 0
    %2051 = vmatprep.subr.mxu0 0.0
    %2052 = vmatpush1.msra.mxu0 %v2049
    %2053 = vmatprep.subr.mxu0 0.0
    %2054 = vmatpush1.msra.mxu0 0.0
    %2055 = vmatprep.subr.mxu0 0.0
    %2056 = vmatpush1.msra.mxu0 0.0
    %2057 = vmatprep.subr.mxu0 0.0
    %2058 = vmatpush1.msra.mxu0 0.0
    %2059 = vmatprep.subr.mxu0 0.0
    %2060 = vmatpush1.msra.mxu0 0.0
    %2061 = vmatprep.subr.mxu0 0.0
    %2062 = vmatpush1.msra.mxu0 0.0
    %2063 = vmatprep.subr.mxu0 0.0
    %2064 = vmatpush1.msra.mxu0 0.0
    %2065 = vmatprep.subr.mxu0 0.0
    %2066 = vmatpush1.msra.mxu0 0.0
    %2067 = vmatprep.subr.mxu0 0.0
    %2068 = vmatpush1.msra.mxu0 0.0
    %2069 = vmatprep.subr.mxu0 0.0
    %2070 = vmatpush1.msra.mxu0 0.0
    %2071 = vmatprep.subr.mxu0 0.0
    %2072 = vmatpush1.msra.mxu0 0.0
    %2073 = vmatprep.subr.mxu0 0.0
    %2074 = vmatpush1.msra.mxu0 0.0
    %2075 = vmatprep.subr.mxu0 0.0
    %2076 = vmatpush1.msra.mxu0 0.0
    %2077 = vmatprep.subr.mxu0 0.0
    %2078 = vmatpush1.msra.mxu0 0.0
    %2079 = vmatprep.subr.mxu0 0.0
    %2080 = vmatpush1.msra.mxu0 0.0
    %2081 = vmatprep.subr.mxu0 0.0
    %2082 = vmatpush1.msra.mxu0 0.0
    %2083 = vmatprep.subr.mxu0 0.0
    %2084 = vmatpush1.msra.mxu0 0.0
    %2085 = vmatprep.subr.mxu0 0.0
    %2086 = vmatpush1.msra.mxu0 0.0
    %2087 = vmatprep.subr.mxu0 0.0
    %2088 = vmatpush1.msra.mxu0 0.0
    %2089 = vmatprep.subr.mxu0 0.0
    %2090 = vmatpush1.msra.mxu0 0.0
    %2091 = vmatprep.subr.mxu0 0.0
    %2092 = vmatpush1.msra.mxu0 0.0
    %2093 = vmatprep.subr.mxu0 0.0
    %2094 = vmatpush1.msra.mxu0 0.0
    %2095 = vmatprep.subr.mxu0 0.0
    %2096 = vmatpush1.msra.mxu0 0.0
    %2097 = vmatprep.subr.mxu0 0.0
    %2098 = vmatpush1.msra.mxu0 0.0
    %2099 = vmatprep.subr.mxu0 0.0
    %2100 = vmatpush1.msra.mxu0 0.0
    %2101 = vmatprep.subr.mxu0 0.0
    %2102 = vmatpush1.msra.mxu0 0.0
    %2103 = vmatprep.subr.mxu0 0.0
    %2104 = vmatpush1.msra.mxu0 0.0
    %2105 = vmatprep.subr.mxu0 0.0
    %2106 = vmatpush1.msra.mxu0 0.0
    %2107 = vmatprep.subr.mxu0 0.0
    %2108 = vmatpush1.msra.mxu0 0.0
    %2109 = vmatprep.subr.mxu0 0.0
    %2110 = vmatpush1.msra.mxu0 0.0
    %2111 = vmatprep.subr.mxu0 0.0
    %2112 = vmatpush1.msra.mxu0 0.0
    %2113 = vmatprep.subr.mxu0 0.0
    %2114 = vmatpush1.msra.mxu0 0.0
    %2115 = vmatprep.mubr.f32.mxu0 0.0
    %2116 = vmatmul.mubr.f32.gmra.mrb[0].mxu0 %v2037
    %v2117 = vpop.f32.mrb[0].mxu0
    %v2118 = vadd.f32 %v1966, %v2117
    %v2119 = vpop.f32.mrb[0].mxu0
    %2120 = vmatprep.mubr.f32.mxu0 0.0
    %2121 = vmatmul.mubr.f32.gmra.mrb[0].mxu0 %v2040
    %v2122 = vpop.f32.mrb[0].mxu0
    %v2123 = vadd.f32 %v1970, %v2122
    %v2124 = vpop.f32.mrb[0].mxu0
    %2125 = vmatprep.mubr.f32.mxu0 0.0
    %2126 = vmatmul.mubr.f32.gmra.mrb[0].mxu0 %v2043
    %v2127 = vpop.f32.mrb[0].mxu0
    %v2128 = vadd.f32 %v1974, %v2127
    %v2129 = vpop.f32.mrb[0].mxu0
    %2130 = vmatprep.mubr.f32.mxu0 0.0
    %2131 = vmatmul.mubr.f32.gmra.mrb[0].mxu0 %v2046
    %v2132 = vpop.f32.mrb[0].mxu0
    %v2133 = vadd.f32 %v1978, %v2132
    %v2134 = vpop.f32.mrb[0].mxu0
    %2135 = vdwg.mxu0
    %v2137 = vsel %vm1270, %v1680, 0
    %v2140 = vsel %vm1270, %v1748, 0
    %v2143 = vsel %vm1270, %v1816, 0
    %v2146 = vsel %vm1270, %v1884, 0
    %v2149 = vsel %vm1273, %v1224, 0
    %2151 = vmatprep.subr.mxu0 0.0
    %2152 = vmatpush1.msra.mxu0 %v2149
    %2153 = vmatprep.subr.mxu0 0.0
    %2154 = vmatpush1.msra.mxu0 0.0
    %2155 = vmatprep.subr.mxu0 0.0
    %2156 = vmatpush1.msra.mxu0 0.0
    %2157 = vmatprep.subr.mxu0 0.0
    %2158 = vmatpush1.msra.mxu0 0.0
    %2159 = vmatprep.subr.mxu0 0.0
    %2160 = vmatpush1.msra.mxu0 0.0
    %2161 = vmatprep.subr.mxu0 0.0
    %2162 = vmatpush1.msra.mxu0 0.0
    %2163 = vmatprep.subr.mxu0 0.0
    %2164 = vmatpush1.msra.mxu0 0.0
    %2165 = vmatprep.subr.mxu0 0.0
    %2166 = vmatpush1.msra.mxu0 0.0
    %2167 = vmatprep.subr.mxu0 0.0
    %2168 = vmatpush1.msra.mxu0 0.0
    %2169 = vmatprep.subr.mxu0 0.0
    %2170 = vmatpush1.msra.mxu0 0.0
    %2171 = vmatprep.subr.mxu0 0.0
    %2172 = vmatpush1.msra.mxu0 0.0
    %2173 = vmatprep.subr.mxu0 0.0
    %2174 = vmatpush1.msra.mxu0 0.0
    %2175 = vmatprep.subr.mxu0 0.0
    %2176 = vmatpush1.msra.mxu0 0.0
    %2177 = vmatprep.subr.mxu0 0.0
    %2178 = vmatpush1.msra.mxu0 0.0
    %2179 = vmatprep.subr.mxu0 0.0
    %2180 = vmatpush1.msra.mxu0 0.0
    %2181 = vmatprep.subr.mxu0 0.0
    %2182 = vmatpush1.msra.mxu0 0.0
    %2183 = vmatprep.subr.mxu0 0.0
    %2184 = vmatpush1.msra.mxu0 0.0
    %2185 = vmatprep.subr.mxu0 0.0
    %2186 = vmatpush1.msra.mxu0 0.0
    %2187 = vmatprep.subr.mxu0 0.0
    %2188 = vmatpush1.msra.mxu0 0.0
    %2189 = vmatprep.subr.mxu0 0.0
    %2190 = vmatpush1.msra.mxu0 0.0
    %2191 = vmatprep.subr.mxu0 0.0
    %2192 = vmatpush1.msra.mxu0 0.0
    %2193 = vmatprep.subr.mxu0 0.0
    %2194 = vmatpush1.msra.mxu0 0.0
    %2195 = vmatprep.subr.mxu0 0.0
    %2196 = vmatpush1.msra.mxu0 0.0
    %2197 = vmatprep.subr.mxu0 0.0
    %2198 = vmatpush1.msra.mxu0 0.0
    %2199 = vmatprep.subr.mxu0 0.0
    %2200 = vmatpush1.msra.mxu0 0.0
    %2201 = vmatprep.subr.mxu0 0.0
    %2202 = vmatpush1.msra.mxu0 0.0
    %2203 = vmatprep.subr.mxu0 0.0
    %2204 = vmatpush1.msra.mxu0 0.0
    %2205 = vmatprep.subr.mxu0 0.0
    %2206 = vmatpush1.msra.mxu0 0.0
    %2207 = vmatprep.subr.mxu0 0.0
    %2208 = vmatpush1.msra.mxu0 0.0
    %2209 = vmatprep.subr.mxu0 0.0
    %2210 = vmatpush1.msra.mxu0 0.0
    %2211 = vmatprep.subr.mxu0 0.0
    %2212 = vmatpush1.msra.mxu0 0.0
    %2213 = vmatprep.subr.mxu0 0.0
    %2214 = vmatpush1.msra.mxu0 0.0
    %2215 = vmatprep.mubr.f32.mxu0 0.0
    %2216 = vmatmul.mubr.f32.gmra.mrb[0].mxu0 %v2137
    %v2217 = vpop.f32.mrb[0].mxu0
    %v2218 = vadd.f32 %v1985, %v2217
    %v2219 = vpop.f32.mrb[0].mxu0
    %2220 = vmatprep.mubr.f32.mxu0 0.0
    %2221 = vmatmul.mubr.f32.gmra.mrb[0].mxu0 %v2140
    %v2222 = vpop.f32.mrb[0].mxu0
    %v2223 = vadd.f32 %v1989, %v2222
    %v2224 = vpop.f32.mrb[0].mxu0
    %2225 = vmatprep.mubr.f32.mxu0 0.0
    %2226 = vmatmul.mubr.f32.gmra.mrb[0].mxu0 %v2143
    %v2227 = vpop.f32.mrb[0].mxu0
    %v2228 = vadd.f32 %v1993, %v2227
    %v2229 = vpop.f32.mrb[0].mxu0
    %2230 = vmatprep.mubr.f32.mxu0 0.0
    %2231 = vmatmul.mubr.f32.gmra.mrb[0].mxu0 %v2146
    %v2232 = vpop.f32.mrb[0].mxu0
    %v2233 = vadd.f32 %v1997, %v2232
    %v2234 = vpop.f32.mrb[0].mxu0
    %2235 = vdwg.mxu0
    %v2237 = vsel %vm1270, %v1681, 0
    %v2240 = vsel %vm1270, %v1749, 0
    %v2243 = vsel %vm1270, %v1817, 0
    %v2246 = vsel %vm1270, %v1885, 0
    %v2249 = vsel %vm1273, %v1225, 0
    %2251 = vmatprep.subr.mxu0 0.0
    %2252 = vmatpush1.msra.mxu0 %v2249
    %2253 = vmatprep.subr.mxu0 0.0
    %2254 = vmatpush1.msra.mxu0 0.0
    %2255 = vmatprep.subr.mxu0 0.0
    %2256 = vmatpush1.msra.mxu0 0.0
    %2257 = vmatprep.subr.mxu0 0.0
    %2258 = vmatpush1.msra.mxu0 0.0
    %2259 = vmatprep.subr.mxu0 0.0
    %2260 = vmatpush1.msra.mxu0 0.0
    %2261 = vmatprep.subr.mxu0 0.0
    %2262 = vmatpush1.msra.mxu0 0.0
    %2263 = vmatprep.subr.mxu0 0.0
    %2264 = vmatpush1.msra.mxu0 0.0
    %2265 = vmatprep.subr.mxu0 0.0
    %2266 = vmatpush1.msra.mxu0 0.0
    %2267 = vmatprep.subr.mxu0 0.0
    %2268 = vmatpush1.msra.mxu0 0.0
    %2269 = vmatprep.subr.mxu0 0.0
    %2270 = vmatpush1.msra.mxu0 0.0
    %2271 = vmatprep.subr.mxu0 0.0
    %2272 = vmatpush1.msra.mxu0 0.0
    %2273 = vmatprep.subr.mxu0 0.0
    %2274 = vmatpush1.msra.mxu0 0.0
    %2275 = vmatprep.subr.mxu0 0.0
    %2276 = vmatpush1.msra.mxu0 0.0
    %2277 = vmatprep.subr.mxu0 0.0
    %2278 = vmatpush1.msra.mxu0 0.0
    %2279 = vmatprep.subr.mxu0 0.0
    %2280 = vmatpush1.msra.mxu0 0.0
    %2281 = vmatprep.subr.mxu0 0.0
    %2282 = vmatpush1.msra.mxu0 0.0
    %2283 = vmatprep.subr.mxu0 0.0
    %2284 = vmatpush1.msra.mxu0 0.0
    %2285 = vmatprep.subr.mxu0 0.0
    %2286 = vmatpush1.msra.mxu0 0.0
    %2287 = vmatprep.subr.mxu0 0.0
    %2288 = vmatpush1.msra.mxu0 0.0
    %2289 = vmatprep.subr.mxu0 0.0
    %2290 = vmatpush1.msra.mxu0 0.0
    %2291 = vmatprep.subr.mxu0 0.0
    %2292 = vmatpush1.msra.mxu0 0.0
    %2293 = vmatprep.subr.mxu0 0.0
    %2294 = vmatpush1.msra.mxu0 0.0
    %2295 = vmatprep.subr.mxu0 0.0
    %2296 = vmatpush1.msra.mxu0 0.0
    %2297 = vmatprep.subr.mxu0 0.0
    %2298 = vmatpush1.msra.mxu0 0.0
    %2299 = vmatprep.subr.mxu0 0.0
    %2300 = vmatpush1.msra.mxu0 0.0
    %2301 = vmatprep.subr.mxu0 0.0
    %2302 = vmatpush1.msra.mxu0 0.0
    %2303 = vmatprep.subr.mxu0 0.0
    %2304 = vmatpush1.msra.mxu0 0.0
    %2305 = vmatprep.subr.mxu0 0.0
    %2306 = vmatpush1.msra.mxu0 0.0
    %2307 = vmatprep.subr.mxu0 0.0
    %2308 = vmatpush1.msra.mxu0 0.0
    %2309 = vmatprep.subr.mxu0 0.0
    %2310 = vmatpush1.msra.mxu0 0.0
    %2311 = vmatprep.subr.mxu0 0.0
    %2312 = vmatpush1.msra.mxu0 0.0
    %2313 = vmatprep.subr.mxu0 0.0
    %2314 = vmatpush1.msra.mxu0 0.0
    %2315 = vmatprep.mubr.f32.mxu0 0.0
    %2316 = vmatmul.mubr.f32.gmra.mrb[0].mxu0 %v2237
    %v2317 = vpop.f32.mrb[0].mxu0
    %v2318 = vadd.f32 %v2004, %v2317
    %v2319 = vpop.f32.mrb[0].mxu0
    %2320 = vmatprep.mubr.f32.mxu0 0.0
    %2321 = vmatmul.mubr.f32.gmra.mrb[0].mxu0 %v2240
    %v2322 = vpop.f32.mrb[0].mxu0
    %v2323 = vadd.f32 %v2008, %v2322
    %v2324 = vpop.f32.mrb[0].mxu0
    %2325 = vmatprep.mubr.f32.mxu0 0.0
    %2326 = vmatmul.mubr.f32.gmra.mrb[0].mxu0 %v2243
    %v2327 = vpop.f32.mrb[0].mxu0
    %v2328 = vadd.f32 %v2012, %v2327
    %v2329 = vpop.f32.mrb[0].mxu0
    %2330 = vmatprep.mubr.f32.mxu0 0.0
    %2331 = vmatmul.mubr.f32.gmra.mrb[0].mxu0 %v2246
    %v2332 = vpop.f32.mrb[0].mxu0
    %v2333 = vadd.f32 %v2016, %v2332
    %v2334 = vpop.f32.mrb[0].mxu0
    %2335 = vdwg.mxu0
    %v2337 = vsel %vm1270, %v1682, 0
    %v2340 = vsel %vm1270, %v1750, 0
    %v2343 = vsel %vm1270, %v1818, 0
    %v2346 = vsel %vm1270, %v1886, 0
    %v2349 = vsel %vm1273, %v1226, 0
    %2351 = vmatprep.subr.mxu0 0.0
    %2352 = vmatpush1.msra.mxu0 %v2349
    %2353 = vmatprep.subr.mxu0 0.0
    %2354 = vmatpush1.msra.mxu0 0.0
    %2355 = vmatprep.subr.mxu0 0.0
    %2356 = vmatpush1.msra.mxu0 0.0
    %2357 = vmatprep.subr.mxu0 0.0
    %2358 = vmatpush1.msra.mxu0 0.0
    %2359 = vmatprep.subr.mxu0 0.0
    %2360 = vmatpush1.msra.mxu0 0.0
    %2361 = vmatprep.subr.mxu0 0.0
    %2362 = vmatpush1.msra.mxu0 0.0
    %2363 = vmatprep.subr.mxu0 0.0
    %2364 = vmatpush1.msra.mxu0 0.0
    %2365 = vmatprep.subr.mxu0 0.0
    %2366 = vmatpush1.msra.mxu0 0.0
    %2367 = vmatprep.subr.mxu0 0.0
    %2368 = vmatpush1.msra.mxu0 0.0
    %2369 = vmatprep.subr.mxu0 0.0
    %2370 = vmatpush1.msra.mxu0 0.0
    %2371 = vmatprep.subr.mxu0 0.0
    %2372 = vmatpush1.msra.mxu0 0.0
    %2373 = vmatprep.subr.mxu0 0.0
    %2374 = vmatpush1.msra.mxu0 0.0
    %2375 = vmatprep.subr.mxu0 0.0
    %2376 = vmatpush1.msra.mxu0 0.0
    %2377 = vmatprep.subr.mxu0 0.0
    %2378 = vmatpush1.msra.mxu0 0.0
    %2379 = vmatprep.subr.mxu0 0.0
    %2380 = vmatpush1.msra.mxu0 0.0
    %2381 = vmatprep.subr.mxu0 0.0
    %2382 = vmatpush1.msra.mxu0 0.0
    %2383 = vmatprep.subr.mxu0 0.0
    %2384 = vmatpush1.msra.mxu0 0.0
    %2385 = vmatprep.subr.mxu0 0.0
    %2386 = vmatpush1.msra.mxu0 0.0
    %2387 = vmatprep.subr.mxu0 0.0
    %2388 = vmatpush1.msra.mxu0 0.0
    %2389 = vmatprep.subr.mxu0 0.0
    %2390 = vmatpush1.msra.mxu0 0.0
    %2391 = vmatprep.subr.mxu0 0.0
    %2392 = vmatpush1.msra.mxu0 0.0
    %2393 = vmatprep.subr.mxu0 0.0
    %2394 = vmatpush1.msra.mxu0 0.0
    %2395 = vmatprep.subr.mxu0 0.0
    %2396 = vmatpush1.msra.mxu0 0.0
    %2397 = vmatprep.subr.mxu0 0.0
    %2398 = vmatpush1.msra.mxu0 0.0
    %2399 = vmatprep.subr.mxu0 0.0
    %2400 = vmatpush1.msra.mxu0 0.0
    %2401 = vmatprep.subr.mxu0 0.0
    %2402 = vmatpush1.msra.mxu0 0.0
    %2403 = vmatprep.subr.mxu0 0.0
    %2404 = vmatpush1.msra.mxu0 0.0
    %2405 = vmatprep.subr.mxu0 0.0
    %2406 = vmatpush1.msra.mxu0 0.0
    %2407 = vmatprep.subr.mxu0 0.0
    %2408 = vmatpush1.msra.mxu0 0.0
    %2409 = vmatprep.subr.mxu0 0.0
    %2410 = vmatpush1.msra.mxu0 0.0
    %2411 = vmatprep.subr.mxu0 0.0
    %2412 = vmatpush1.msra.mxu0 0.0
    %2413 = vmatprep.subr.mxu0 0.0
    %2414 = vmatpush1.msra.mxu0 0.0
    %2415 = vmatprep.mubr.f32.mxu0 0.0
    %2416 = vmatmul.mubr.f32.gmra.mrb[0].mxu0 %v2337
    %v2417 = vpop.f32.mrb[0].mxu0
    %v2418 = vadd.f32 %v2023, %v2417
    %v2419 = vpop.f32.mrb[0].mxu0
    %2420 = vmatprep.mubr.f32.mxu0 0.0
    %2421 = vmatmul.mubr.f32.gmra.mrb[0].mxu0 %v2340
    %v2422 = vpop.f32.mrb[0].mxu0
    %v2423 = vadd.f32 %v2027, %v2422
    %v2424 = vpop.f32.mrb[0].mxu0
    %2425 = vmatprep.mubr.f32.mxu0 0.0
    %2426 = vmatmul.mubr.f32.gmra.mrb[0].mxu0 %v2343
    %v2427 = vpop.f32.mrb[0].mxu0
    %v2428 = vadd.f32 %v2031, %v2427
    %v2429 = vpop.f32.mrb[0].mxu0
    %2430 = vmatprep.mubr.f32.mxu0 0.0
    %2431 = vmatmul.mubr.f32.gmra.mrb[0].mxu0 %v2346
    %v2432 = vpop.f32.mrb[0].mxu0
    %v2433 = vadd.f32 %v2035, %v2432
    %v2434 = vpop.f32.mrb[0].mxu0
    %2435 = vdwg.mxu0
    %v2436 = vsel %vm371, %v2118, 0.0
    %2437 = vadd.xlane.f32.xlu0 %v2436
    %v2438 = vpop.xlane.xlu0 %2437
    %v2439 = vsel %vm371, %v2123, 0.0
    %2440 = vadd.xlane.f32.xlu0 %v2439
    %v2441 = vpop.xlane.xlu0 %2440
    %v2442 = vsel %vm371, %v2128, 0.0
    %2443 = vadd.xlane.f32.xlu0 %v2442
    %v2444 = vpop.xlane.xlu0 %2443
    %v2445 = vsel %vm371, %v2133, 0.0
    %2446 = vadd.xlane.f32.xlu0 %v2445
    %v2447 = vpop.xlane.xlu0 %2446
    %v2448 = vsel %vm371, %v2218, 0.0
    %2449 = vadd.xlane.f32.xlu0 %v2448
    %v2450 = vpop.xlane.xlu0 %2449
    %v2451 = vsel %vm371, %v2223, 0.0
    %2452 = vadd.xlane.f32.xlu0 %v2451
    %v2453 = vpop.xlane.xlu0 %2452
    %v2454 = vsel %vm371, %v2228, 0.0
    %2455 = vadd.xlane.f32.xlu0 %v2454
    %v2456 = vpop.xlane.xlu0 %2455
    %v2457 = vsel %vm371, %v2233, 0.0
    %2458 = vadd.xlane.f32.xlu0 %v2457
    %v2459 = vpop.xlane.xlu0 %2458
    %v2460 = vsel %vm371, %v2318, 0.0
    %2461 = vadd.xlane.f32.xlu0 %v2460
    %v2462 = vpop.xlane.xlu0 %2461
    %v2463 = vsel %vm371, %v2323, 0.0
    %2464 = vadd.xlane.f32.xlu0 %v2463
    %v2465 = vpop.xlane.xlu0 %2464
    %v2466 = vsel %vm371, %v2328, 0.0
    %2467 = vadd.xlane.f32.xlu0 %v2466
    %v2468 = vpop.xlane.xlu0 %2467
    %v2469 = vsel %vm371, %v2333, 0.0
    %2470 = vadd.xlane.f32.xlu0 %v2469
    %v2471 = vpop.xlane.xlu0 %2470
    %v2472 = vsel %vm371, %v2418, 0.0
    %2473 = vadd.xlane.f32.xlu0 %v2472
    %v2474 = vpop.xlane.xlu0 %2473
    %v2475 = vsel %vm371, %v2423, 0.0
    %2476 = vadd.xlane.f32.xlu0 %v2475
    %v2477 = vpop.xlane.xlu0 %2476
    %v2478 = vsel %vm371, %v2428, 0.0
    %2479 = vadd.xlane.f32.xlu0 %v2478
    %v2480 = vpop.xlane.xlu0 %2479
    %v2481 = vsel %vm371, %v2433, 0.0
    %2482 = vadd.xlane.f32.xlu0 %v2481
    %v2483 = vpop.xlane.xlu0 %2482
    %v2484 = vmul.f32 %v2438, %v420
    %v2485 = vmul.f32 %v2441, %v420
    %v2486 = vmul.f32 %v2444, %v420
    %v2487 = vmul.f32 %v2447, %v420
    %v2488 = vmul.f32 %v2450, %v420
    %v2489 = vmul.f32 %v2453, %v420
    %v2490 = vmul.f32 %v2456, %v420
    %v2491 = vmul.f32 %v2459, %v420
    %v2492 = vmul.f32 %v2462, %v420
    %v2493 = vmul.f32 %v2465, %v420
    %v2494 = vmul.f32 %v2468, %v420
    %v2495 = vmul.f32 %v2471, %v420
    %v2496 = vmul.f32 %v2474, %v420
    %v2497 = vmul.f32 %v2477, %v420
    %v2498 = vmul.f32 %v2480, %v420
    %v2499 = vmul.f32 %v2483, %v420
    %v2500 = vsub.f32 0.0, %v2484
    %v2501 = vsub.f32 0.0, %v2485
    %v2502 = vsub.f32 0.0, %v2486
    %v2503 = vsub.f32 0.0, %v2487
    %v2504 = vsub.f32 0.0, %v2488
    %v2505 = vsub.f32 0.0, %v2489
    %v2506 = vsub.f32 0.0, %v2490
    %v2507 = vsub.f32 0.0, %v2491
    %v2508 = vsub.f32 0.0, %v2492
    %v2509 = vsub.f32 0.0, %v2493
    %v2510 = vsub.f32 0.0, %v2494
    %v2511 = vsub.f32 0.0, %v2495
    %v2512 = vsub.f32 0.0, %v2496
    %v2513 = vsub.f32 0.0, %v2497
    %v2514 = vsub.f32 0.0, %v2498
    %v2515 = vsub.f32 0.0, %v2499
    %v2516 = vmul.f32 %v2500, 1.442695
    %v2517 = vpow.pop %v2516
    %v2518 = vmul.f32 %v2501, 1.442695
    %v2519 = vpow.pop %v2518
    %v2520 = vmul.f32 %v2502, 1.442695
    %v2521 = vpow.pop %v2520
    %v2522 = vmul.f32 %v2503, 1.442695
    %v2523 = vpow.pop %v2522
    %v2524 = vmul.f32 %v2504, 1.442695
    %v2525 = vpow.pop %v2524
    %v2526 = vmul.f32 %v2505, 1.442695
    %v2527 = vpow.pop %v2526
    %v2528 = vmul.f32 %v2506, 1.442695
    %v2529 = vpow.pop %v2528
    %v2530 = vmul.f32 %v2507, 1.442695
    %v2531 = vpow.pop %v2530
    %v2532 = vmul.f32 %v2508, 1.442695
    %v2533 = vpow.pop %v2532
    %v2534 = vmul.f32 %v2509, 1.442695
    %v2535 = vpow.pop %v2534
    %v2536 = vmul.f32 %v2510, 1.442695
    %v2537 = vpow.pop %v2536
    %v2538 = vmul.f32 %v2511, 1.442695
    %v2539 = vpow.pop %v2538
    %v2540 = vmul.f32 %v2512, 1.442695
    %v2541 = vpow.pop %v2540
    %v2542 = vmul.f32 %v2513, 1.442695
    %v2543 = vpow.pop %v2542
    %v2544 = vmul.f32 %v2514, 1.442695
    %v2545 = vpow.pop %v2544
    %v2546 = vmul.f32 %v2515, 1.442695
    %v2547 = vpow.pop %v2546
    %v2548 = vadd.f32 %v2517, 1.0
    %v2549 = vadd.f32 %v2519, 1.0
    %v2550 = vadd.f32 %v2521, 1.0
    %v2551 = vadd.f32 %v2523, 1.0
    %v2552 = vadd.f32 %v2525, 1.0
    %v2553 = vadd.f32 %v2527, 1.0
    %v2554 = vadd.f32 %v2529, 1.0
    %v2555 = vadd.f32 %v2531, 1.0
    %v2556 = vadd.f32 %v2533, 1.0
    %v2557 = vadd.f32 %v2535, 1.0
    %v2558 = vadd.f32 %v2537, 1.0
    %v2559 = vadd.f32 %v2539, 1.0
    %v2560 = vadd.f32 %v2541, 1.0
    %v2561 = vadd.f32 %v2543, 1.0
    %v2562 = vadd.f32 %v2545, 1.0
    %v2563 = vadd.f32 %v2547, 1.0
    %v2564 = vrcp.pop %v2548
    %v2565 = vmul.f32 1.0, %v2564
    %v2566 = vrcp.pop %v2549
    %v2567 = vmul.f32 1.0, %v2566
    %v2568 = vrcp.pop %v2550
    %v2569 = vmul.f32 1.0, %v2568
    %v2570 = vrcp.pop %v2551
    %v2571 = vmul.f32 1.0, %v2570
    %v2572 = vrcp.pop %v2552
    %v2573 = vmul.f32 1.0, %v2572
    %v2574 = vrcp.pop %v2553
    %v2575 = vmul.f32 1.0, %v2574
    %v2576 = vrcp.pop %v2554
    %v2577 = vmul.f32 1.0, %v2576
    %v2578 = vrcp.pop %v2555
    %v2579 = vmul.f32 1.0, %v2578
    %v2580 = vrcp.pop %v2556
    %v2581 = vmul.f32 1.0, %v2580
    %v2582 = vrcp.pop %v2557
    %v2583 = vmul.f32 1.0, %v2582
    %v2584 = vrcp.pop %v2558
    %v2585 = vmul.f32 1.0, %v2584
    %v2586 = vrcp.pop %v2559
    %v2587 = vmul.f32 1.0, %v2586
    %v2588 = vrcp.pop %v2560
    %v2589 = vmul.f32 1.0, %v2588
    %v2590 = vrcp.pop %v2561
    %v2591 = vmul.f32 1.0, %v2590
    %v2592 = vrcp.pop %v2562
    %v2593 = vmul.f32 1.0, %v2592
    %v2594 = vrcp.pop %v2563
    %v2595 = vmul.f32 1.0, %v2594
    %v2596 = vpack.c.bf16 %v2567, %v2565
    %v2597 = vpack.c.bf16 %v2571, %v2569
    %v2598 = vpack.c.bf16 %v2575, %v2573
    %v2599 = vpack.c.bf16 %v2579, %v2577
    %v2600 = vpack.c.bf16 %v2583, %v2581
    %v2601 = vpack.c.bf16 %v2587, %v2585
    %v2602 = vpack.c.bf16 %v2591, %v2589
    %v2603 = vpack.c.bf16 %v2595, %v2593
    %v2604 = vld [vmem:[%s0] sm:$0xff]
    %v2605 = vld [vmem:[%s0 + $0x8] sm:$0xff]
    %v2606 = vld [vmem:[%s0 + $0x10] sm:$0xff]
    %v2607 = vld [vmem:[%s0 + $0x18] sm:$0xff]
    %v2608 = vld [vmem:[%s0 + $0x20] sm:$0xff]
    %v2609 = vld [vmem:[%s0 + $0x28] sm:$0xff]
    %v2610 = vld [vmem:[%s0 + $0x30] sm:$0xff]
    %v2611 = vld [vmem:[%s0 + $0x38] sm:$0xff]
    %v2612 = vld [vmem:[%s0 + $0x40] sm:$0xff]
    %v2613 = vld [vmem:[%s0 + $0x48] sm:$0xff]
    %v2614 = vld [vmem:[%s0 + $0x50] sm:$0xff]
    %v2615 = vld [vmem:[%s0 + $0x58] sm:$0xff]
    %v2616 = vld [vmem:[%s0 + $0x60] sm:$0xff]
    %v2617 = vld [vmem:[%s0 + $0x68] sm:$0xff]
    %v2618 = vld [vmem:[%s0 + $0x70] sm:$0xff]
    %v2619 = vld [vmem:[%s0 + $0x78] sm:$0xff]
    %v2629 = vunpack.c.l.s4 839922192
    %v2630 = vunpack.c.0.s8 %v2629
    %v2631 = vlaneseq
    %v2632 = vshrl.u32 %v2631, 7
    %v2633 = vsub.s32 %v2630, %v2632
    %v2634 = vrot.slane %v2596, %v2633
    %v2636 = vunpack.c.l.s4 1985246804
    %v2637 = vunpack.c.0.s8 %v2636
    %v2638 = vlaneseq
    %v2639 = vshrl.u32 %v2638, 7
    %v2640 = vsub.s32 %v2637, %v2639
    %v2641 = vrot.slane %v2596, %v2640
    %v2643 = vunpack.c.l.s4 839922192
    %v2644 = vunpack.c.0.s8 %v2643
    %v2645 = vlaneseq
    %v2646 = vshrl.u32 %v2645, 7
    %v2647 = vsub.s32 %v2644, %v2646
    %v2648 = vrot.slane %v2597, %v2647
    %v2650 = vunpack.c.l.s4 1985246804
    %v2651 = vunpack.c.0.s8 %v2650
    %v2652 = vlaneseq
    %v2653 = vshrl.u32 %v2652, 7
    %v2654 = vsub.s32 %v2651, %v2653
    %v2655 = vrot.slane %v2597, %v2654
    %v2657 = vunpack.c.l.s4 839922192
    %v2658 = vunpack.c.0.s8 %v2657
    %v2659 = vlaneseq
    %v2660 = vshrl.u32 %v2659, 7
    %v2661 = vsub.s32 %v2658, %v2660
    %v2662 = vrot.slane %v2598, %v2661
    %v2664 = vunpack.c.l.s4 1985246804
    %v2665 = vunpack.c.0.s8 %v2664
    %v2666 = vlaneseq
    %v2667 = vshrl.u32 %v2666, 7
    %v2668 = vsub.s32 %v2665, %v2667
    %v2669 = vrot.slane %v2598, %v2668
    %v2671 = vunpack.c.l.s4 839922192
    %v2672 = vunpack.c.0.s8 %v2671
    %v2673 = vlaneseq
    %v2674 = vshrl.u32 %v2673, 7
    %v2675 = vsub.s32 %v2672, %v2674
    %v2676 = vrot.slane %v2599, %v2675
    %v2678 = vunpack.c.l.s4 1985246804
    %v2679 = vunpack.c.0.s8 %v2678
    %v2680 = vlaneseq
    %v2681 = vshrl.u32 %v2680, 7
    %v2682 = vsub.s32 %v2679, %v2681
    %v2683 = vrot.slane %v2599, %v2682
    %v2685 = vunpack.c.l.s4 839922192
    %v2686 = vunpack.c.0.s8 %v2685
    %v2687 = vlaneseq
    %v2688 = vshrl.u32 %v2687, 7
    %v2689 = vsub.s32 %v2686, %v2688
    %v2690 = vrot.slane %v2600, %v2689
    %v2692 = vunpack.c.l.s4 1985246804
    %v2693 = vunpack.c.0.s8 %v2692
    %v2694 = vlaneseq
    %v2695 = vshrl.u32 %v2694, 7
    %v2696 = vsub.s32 %v2693, %v2695
    %v2697 = vrot.slane %v2600, %v2696
    %v2699 = vunpack.c.l.s4 839922192
    %v2700 = vunpack.c.0.s8 %v2699
    %v2701 = vlaneseq
    %v2702 = vshrl.u32 %v2701, 7
    %v2703 = vsub.s32 %v2700, %v2702
    %v2704 = vrot.slane %v2601, %v2703
    %v2706 = vunpack.c.l.s4 1985246804
    %v2707 = vunpack.c.0.s8 %v2706
    %v2708 = vlaneseq
    %v2709 = vshrl.u32 %v2708, 7
    %v2710 = vsub.s32 %v2707, %v2709
    %v2711 = vrot.slane %v2601, %v2710
    %v2713 = vunpack.c.l.s4 839922192
    %v2714 = vunpack.c.0.s8 %v2713
    %v2715 = vlaneseq
    %v2716 = vshrl.u32 %v2715, 7
    %v2717 = vsub.s32 %v2714, %v2716
    %v2718 = vrot.slane %v2602, %v2717
    %v2720 = vunpack.c.l.s4 1985246804
    %v2721 = vunpack.c.0.s8 %v2720
    %v2722 = vlaneseq
    %v2723 = vshrl.u32 %v2722, 7
    %v2724 = vsub.s32 %v2721, %v2723
    %v2725 = vrot.slane %v2602, %v2724
    %v2727 = vunpack.c.l.s4 839922192
    %v2728 = vunpack.c.0.s8 %v2727
    %v2729 = vlaneseq
    %v2730 = vshrl.u32 %v2729, 7
    %v2731 = vsub.s32 %v2728, %v2730
    %v2732 = vrot.slane %v2603, %v2731
    %v2734 = vunpack.c.l.s4 1985246804
    %v2735 = vunpack.c.0.s8 %v2734
    %v2736 = vlaneseq
    %v2737 = vshrl.u32 %v2736, 7
    %v2738 = vsub.s32 %v2735, %v2737
    %v2739 = vrot.slane %v2603, %v2738
    %v2756 = vmul.bf16 %v2604, %v2634
    %v2757 = vmul.bf16 %v2605, %v2641
    %v2758 = vmul.bf16 %v2606, %v2648
    %v2759 = vmul.bf16 %v2607, %v2655
    %v2760 = vmul.bf16 %v2608, %v2662
    %v2761 = vmul.bf16 %v2609, %v2669
    %v2762 = vmul.bf16 %v2610, %v2676
    %v2763 = vmul.bf16 %v2611, %v2683
    %v2764 = vmul.bf16 %v2612, %v2690
    %v2765 = vmul.bf16 %v2613, %v2697
    %v2766 = vmul.bf16 %v2614, %v2704
    %v2767 = vmul.bf16 %v2615, %v2711
    %v2768 = vmul.bf16 %v2616, %v2718
    %v2769 = vmul.bf16 %v2617, %v2725
    %v2770 = vmul.bf16 %v2618, %v2732
    %v2771 = vmul.bf16 %v2619, %v2739
    %2772 = vst [vmem:[#allocation2] sm:$0xff] %v2756
    %2773 = vst [vmem:[#allocation2 + $0x8] sm:$0xff] %v2757
    %2774 = vst [vmem:[#allocation2 + $0x10] sm:$0xff] %v2758
    %2775 = vst [vmem:[#allocation2 + $0x18] sm:$0xff] %v2759
    %2776 = vst [vmem:[#allocation2 + $0x20] sm:$0xff] %v2760
    %2777 = vst [vmem:[#allocation2 + $0x28] sm:$0xff] %v2761
    %2778 = vst [vmem:[#allocation2 + $0x30] sm:$0xff] %v2762
    %2779 = vst [vmem:[#allocation2 + $0x38] sm:$0xff] %v2763
    %2780 = vst [vmem:[#allocation2 + $0x40] sm:$0xff] %v2764
    %2781 = vst [vmem:[#allocation2 + $0x48] sm:$0xff] %v2765
    %2782 = vst [vmem:[#allocation2 + $0x50] sm:$0xff] %v2766
    %2783 = vst [vmem:[#allocation2 + $0x58] sm:$0xff] %v2767
    %2784 = vst [vmem:[#allocation2 + $0x60] sm:$0xff] %v2768
    %2785 = vst [vmem:[#allocation2 + $0x68] sm:$0xff] %v2769
    %2786 = vst [vmem:[#allocation2 + $0x70] sm:$0xff] %v2770
    %2787 = vst [vmem:[#allocation2 + $0x78] sm:$0xff] %v2771
    // Predicated region
    $region50: #{tpu_custom_call.1} parent=1 // pred_check
      _
    $region51: #{tpu_custom_call.1} parent=1 // pred_check_branch
      %2789 = sbr.rel (0) target = $region53
    $region52: #{tpu_custom_call.1} parent=1 // pred_region
      %s2791 = ssub.s32 2048, 2048
      %2792 = vsyncadd [#allocation3], %s2791
      %s2793 = sshll.u32 [#allocation2], 4
      %s2794 = int_to_ptr.vmem [resolvable:$true] %s2793
      %2799 = dma.vmem_to_hbm [thread:$0]  %s2794, 2048, %s12, [#allocation3], 128, 128, 8
    $region53: #{tpu_custom_call.1} parent=1 // pred_fallthru
      _
    // Predicated region
    $region54: #{tpu_custom_call.1} parent=1 // pred_check
      _
    $region55: #{tpu_custom_call.1} parent=1 // pred_check_branch
      %2801 = sbr.rel (0) target = $region57
    $region56: #{tpu_custom_call.1} parent=1 // pred_region
      %2802 = dma.done [#allocation3], 2048
    $region57: #{tpu_custom_call.1} parent=1 // pred_fallthru
      _
    %2803 = vsyncpa [#allocation3], 1

</llo_original>
